<compile_context>
chip_gen: v5e
topology: v5e:2x2
jax: 0.10.0
libtpu: 0.0.40
codegen_flags: <defaults>
</compile_context>

<pallas_src>
import functools
import math

import jax
import jax.numpy as jnp
from jax import lax
from jax.experimental import pallas as pl
from jax.experimental.pallas import tpu as pltpu

BN_EPS = 1e-5            # PyTorch BatchNorm1d default eps
L2_EPS = 1e-12           # F.normalize default eps
LANE = 128
MATMUL_DTYPE = jnp.bfloat16   # MXU-native inputs; accumulate in f32.


def _round_up(x, m):
    return (x + m - 1) // m * m


def _tensorcores_per_device():
    """>=2 grid steps only pay off on multi-TensorCore chips (v4/v5p megacore, v7x);
    single-TC v5e/v6e prefer a 1-step grid (no per-step pipeline overhead)."""
    try:
        info = pltpu.get_tpu_info()
        for attr in ("num_tensorcores", "tensorcores_per_chip", "num_cores",
                     "core_count"):
            n = getattr(info, attr, None)
            if isinstance(n, int) and n > 0:
                return n
    except Exception:
        pass
    try:
        kind = jax.devices()[0].device_kind.lower()
    except Exception:
        return 1
    return 2 if any(t in kind for t in ("v4", "v5p", "7x", "v7")) else 1


def _pick_batch_tile(batch, num_cores, cap=8):
    """Largest divisor of `batch` (<= cap, to bound the static per-sample unroll);
    on multi-TC chips prefer the largest tile that still gives >= num_cores steps."""
    divisors = [d for d in range(1, batch + 1) if batch % d == 0 and d <= cap]
    if num_cores > 1:
        multi = [d for d in divisors if batch // d >= num_cores]
        if multi:
            return max(multi)
    return max(divisors)


# ----------------------------------------------------------------------------
# Kernel
# ----------------------------------------------------------------------------
def _nextvlad_tile(x, w0, wproj, bias, cw2, flatmask, gm, gmt, *,
                   groups, num_clusters, group_size):
    """NeXtVLAD aggregation for a (Bt, M, D) batch tile.

    Returns the lane-dense (Bt, group_size * num_clusters) VLAD descriptor,
    flattened (group_size, cluster) C-order (== torch (B, gs, K).reshape(B, gs*K)).
    bn0 is pre-folded into wproj/bias; bn1 is folded into wf by the caller.
    """
    G, K, gs = groups, num_clusters, group_size
    Bt, M, D = x.shape
    GK = G * K
    lamb_d = G * gs
    Nf = Bt * M

    b0 = bias[:, :lamb_d]
    bp = bias[:, lamb_d:]
    colsel = flatmask[:K, :]        # (K,  gs*K)  colsel[k, j] = (j %  K == k)
    rowmask = flatmask[K:, :]       # (gs, gs*K)  rowmask[s, j] = (j // K == s)

    # ---- shared projections over all frames of the tile (one GEMM each) ----
    x2 = x.reshape(Nf, D).astype(MATMUL_DTYPE)
    x_exp = jnp.dot(x2, w0, preferred_element_type=jnp.float32) + b0        # (Nf, lamb_d)
    proj = jnp.dot(x_exp.astype(MATMUL_DTYPE), wproj,
                   preferred_element_type=jnp.float32) + bp                 # (Nf, G+GK)
    attn = jax.nn.sigmoid(proj[:, :G])                                      # (Nf, G)
    act = proj[:, G:]                                                       # (Nf, GK)

    # ---- per-group softmax over K clusters, lane-dense (shift-invariant) ----
    rmax = jnp.max(act, axis=-1, keepdims=True)
    e = jnp.exp(act - rmax)
    den_g = jnp.dot(e.astype(MATMUL_DTYPE), gm,
                    preferred_element_type=jnp.float32)                     # (Nf, G)
    ratio_g = attn * pl.reciprocal(jnp.maximum(den_g, 1e-30), approx=True)  # (Nf, G)
    ratio = jnp.dot(ratio_g.astype(MATMUL_DTYPE), gmt,
                    preferred_element_type=jnp.float32)                     # (Nf, GK)
    act_g = e * ratio                                                       # (Nf, GK) = softmax * attn

    # ---- real VLAD contraction over (frame, group): Bt*G small MXU matmuls ----
    xe_t = x_exp.T                                                          # (lamb_d, Nf) f32
    rows = []
    for b in range(Bt):                       # static unroll (Bt <= 8)
        vlad_b = jnp.zeros((gs, K), jnp.float32)
        asum_b = jnp.zeros((1, K), jnp.float32)
        for g in range(G):                    # static unroll (G small)
            xgb = xe_t[g * gs:(g + 1) * gs, b * M:(b + 1) * M]              # (gs, M)
            agb = act_g[b * M:(b + 1) * M, g * K:(g + 1) * K]               # (M, K)
            vlad_b = vlad_b + jnp.dot(xgb.astype(MATMUL_DTYPE),
                                      agb.astype(MATMUL_DTYPE),
                                      preferred_element_type=jnp.float32)
            asum_b = asum_b + jnp.sum(agb, axis=0, keepdims=True)
        # residual term and L2-normalization across the group_size axis
        vlad_b = vlad_b - asum_b * cw2                                      # (gs, K)
        ss = jnp.sum(vlad_b * vlad_b, axis=0, keepdims=True)                # (1, K)
        vlad_b = vlad_b * lax.rsqrt(jnp.maximum(ss, L2_EPS * L2_EPS))
        # flatten (gs, K) -> (1, gs*K) lane-dense via tiny per-sample mask matmul
        t = jnp.dot(vlad_b.astype(MATMUL_DTYPE), colsel,
                    preferred_element_type=jnp.float32)                     # (gs, gs*K)
        rows.append(jnp.sum(t * rowmask, axis=0, keepdims=True))            # (1, gs*K)
    if Bt == 1:
        return rows[0]
    return jnp.concatenate(rows, axis=0)                                    # (Bt, gs*K)


def fusion_model_kernel(
        xv_ref, xa_ref, gmask_ref,
        vw0_ref, vwp_ref, vb_ref, vcw2_ref, vfm_ref,
        aw0_ref, awp_ref, ab_ref, acw2_ref, afm_ref,
        wf_ref, ws_ref, we_ref, wc_ref, bfc_ref,
        logits_ref, output_ref,
        *, groups, num_clusters, video_gs, audio_gs, hidden, flat_out):
    G, K = groups, num_clusters
    GK = G * K
    gmask = gmask_ref[...]
    gm = gmask[:GK, :G]                 # (GK, G) group membership
    gmt = gmask[GK:, :]                 # (G, GK) broadcast-back mask

    v_feat = _nextvlad_tile(xv_ref[...], vw0_ref[...], vwp_ref[...], vb_ref[...],
                            vcw2_ref[...], vfm_ref[...], gm, gmt,
                            groups=G, num_clusters=K, group_size=video_gs)
    a_feat = _nextvlad_tile(xa_ref[...], aw0_ref[...], awp_ref[...], ab_ref[...],
                            acw2_ref[...], afm_ref[...], gm, gmt,
                            groups=G, num_clusters=K, group_size=audio_gs)

    # SE fusion on concat([video, audio]); bn1 eval scale is folded into wf.
    feat = jnp.concatenate([v_feat, a_feat], axis=1)                        # (Bt, Hv+Ha)
    bfc = bfc_ref[...]
    bf = bfc[:, :hidden]
    bc = bfc[:, hidden:]
    fused = jnp.dot(feat.astype(MATMUL_DTYPE), wf_ref[...],
                    preferred_element_type=jnp.float32) + bf                # (Bt, H)
    sq = jnp.maximum(jnp.dot(fused.astype(MATMUL_DTYPE), ws_ref[...],
                             preferred_element_type=jnp.float32), 0.0)
    gates = jax.nn.sigmoid(jnp.dot(sq.astype(MATMUL_DTYPE), we_ref[...],
                                   preferred_element_type=jnp.float32))
    gated = fused * gates

    # Classifier; classes padded to 128 lanes -> unmasked lane-dense stores.
    logits = jnp.dot(gated.astype(MATMUL_DTYPE), wc_ref[...],
                     preferred_element_type=jnp.float32) + bc               # (Bt, NCpad)
    probs = jax.nn.sigmoid(logits)
    if flat_out:
        logits_ref[...] = logits
        output_ref[...] = probs
    else:
        logits_ref[...] = logits[:, None, :]
        output_ref[...] = probs[:, None, :]


def fusion_model_forward(data, params, cfg):
    xv = data["video_feature"]
    xa = data["audio_feature"]
    B, Mv, Dv = xv.shape
    _, Ma, Da = xa.shape
    nc = cfg["num_classes"]
    hidden = cfg["hidden_size"]
    nc_pad = params["fusion"]["wc"].shape[1]

    num_cores = _tensorcores_per_device()
    bt = _pick_batch_tile(B, num_cores)
    grid = (B // bt,)
    # Full-sublane, lane-dense 2-D output stores when the tile allows; otherwise the
    # (B, 1, nc_pad) fallback (still unmasked on the lane axis).
    flat_out = (bt == B) or (bt % 8 == 0)

    pv, pa, pf = params["video"], params["audio"], params["fusion"]
    weights = [params["gmask"],
               pv["w0"], pv["wproj"], pv["bias"], pv["cw2"], pv["flatmask"],
               pa["w0"], pa["wproj"], pa["bias"], pa["cw2"], pa["flatmask"],
               pf["wf"], pf["ws"], pf["we"], pf["wc"], pf["bias"]]

    def _rep(a):
        return pl.BlockSpec(a.shape, lambda i, _n=a.ndim: (0,) * _n)

    kernel = functools.partial(
        fusion_model_kernel, groups=cfg["groups"], num_clusters=cfg["num_clusters"],
        video_gs=cfg["video_gs"], audio_gs=cfg["audio_gs"], hidden=hidden,
        flat_out=flat_out)

    if flat_out:
        out_shape = (jax.ShapeDtypeStruct((B, nc_pad), jnp.float32),
                     jax.ShapeDtypeStruct((B, nc_pad), jnp.float32))
        out_specs = (pl.BlockSpec((bt, nc_pad), lambda i: (i, 0)),
                     pl.BlockSpec((bt, nc_pad), lambda i: (i, 0)))
    else:
        out_shape = (jax.ShapeDtypeStruct((B, 1, nc_pad), jnp.float32),
                     jax.ShapeDtypeStruct((B, 1, nc_pad), jnp.float32))
        out_specs = (pl.BlockSpec((bt, 1, nc_pad), lambda i: (i, 0, 0)),
                     pl.BlockSpec((bt, 1, nc_pad), lambda i: (i, 0, 0)))

    # NOTE: at toy sizes everything fits the default scoped-VMEM limit; when scaling
    # to real NeXtVLAD dims, budget bt against (Bt*M*lamb_d) f32 activations and set
    # pltpu.CompilerParams(vmem_limit_bytes=...) explicitly (64 MiB physical on v7x).
    logits_pad, output_pad = pl.pallas_call(
        kernel,
        out_shape=out_shape,
        grid=grid,
        in_specs=[pl.BlockSpec((bt, Mv, Dv), lambda i: (i, 0, 0)),
                  pl.BlockSpec((bt, Ma, Da), lambda i: (i, 0, 0))]
                 + [_rep(a) for a in weights],
        out_specs=out_specs,
        compiler_params=pltpu.CompilerParams(
            dimension_semantics=("parallel",)),
    )(xv, xa, *weights)

    if flat_out:
        logits = logits_pad[:, :nc]
        output = output_pad[:, :nc]
    else:
        logits = logits_pad[:, 0, :nc]
        output = output_pad[:, 0, :nc]
    return {"all_logits": logits, "all_output": output,
            "text_logits": 0, "text_output": 0}


# ----------------------------------------------------------------------------
# Pure-JAX f32 reference (same folded parameters, no Pallas) for validation.
# ----------------------------------------------------------------------------
def fusion_model_reference(data, params, cfg):
    G, K = cfg["groups"], cfg["num_clusters"]

    def nextvlad(x, p, gs):
        B, M, D = x.shape
        lamb_d = G * gs
        w0 = p["w0"].astype(jnp.float32)
        wp = p["wproj"].astype(jnp.float32)
        b0 = p["bias"][:, :lamb_d]
        bp = p["bias"][:, lamb_d:]
        xe = x.reshape(B * M, D) @ w0 + b0                        # (BM, lamb_d)
        proj = xe @ wp + bp                                       # (BM, G+GK)
        attn = jax.nn.sigmoid(proj[:, :G])
        act = jax.nn.softmax(proj[:, G:].reshape(B * M, G, K), axis=-1)
        act = act * attn[:, :, None]
        xe_r = xe.reshape(B, M, G, gs)
        act_r = act.reshape(B, M, G, K)
        vlad = jnp.einsum("bmgs,bmgk->bsk", xe_r, act_r)          # (B, gs, K)
        a_sum = jnp.sum(act_r, axis=(1, 2))                       # (B, K)
        vlad = vlad - a_sum[:, None, :] * p["cw2"][None]
        norm = jnp.sqrt(jnp.sum(vlad * vlad, axis=1, keepdims=True))
        vlad = vlad / jnp.maximum(norm, L2_EPS)
        return vlad.reshape(B, gs * K)

    v = nextvlad(data["video_feature"], params["video"], cfg["video_gs"])
    a = nextvlad(data["audio_feature"], params["audio"], cfg["audio_gs"])
    pf = params["fusion"]
    H = cfg["hidden_size"]
    nc = cfg["num_classes"]
    feat = jnp.concatenate([v, a], axis=1)
    fused = feat @ pf["wf"].astype(jnp.float32) + pf["bias"][:, :H]
    sq = jnp.maximum(fused @ pf["ws"].astype(jnp.float32), 0.0)
    gates = jax.nn.sigmoid(sq @ pf["we"].astype(jnp.float32))
    gated = fused * gates
    logits = gated @ pf["wc"].astype(jnp.float32) + pf["bias"][:, H:]
    return logits[:, :nc], jax.nn.sigmoid(logits)[:, :nc]


# ----------------------------------------------------------------------------
# Parameter construction (deterministic, synthetic).  BN folds and all selection
# masks are built HERE, on the host, not per grid step inside the kernel.
# ----------------------------------------------------------------------------
def make_group_masks(groups, num_clusters):
    G, K = groups, num_clusters
    GK = G * K
    q = jnp.arange(GK)
    gm = (q[:, None] // K == jnp.arange(G)[None, :]).astype(MATMUL_DTYPE)   # (GK, G)
    gmask = jnp.zeros((GK + G, GK), MATMUL_DTYPE)
    gmask = gmask.at[:GK, :G].set(gm)
    gmask = gmask.at[GK:, :].set(gm.T)
    return gmask


def make_nextvlad_params(key, dim, num_clusters, lamb, groups):
    lamb_d = lamb * dim
    gs = lamb_d // groups
    gk = groups * num_clusters
    K = num_clusters
    ks = jax.random.split(key, 7)
    s = 0.02
    bn0 = 1.0 / math.sqrt(1.0 + BN_EPS)   # bn0 eval-mode scale folded into wgk / bgk
    w0 = jax.random.normal(ks[0], (dim, lamb_d), jnp.float32) * s
    wg = jax.random.normal(ks[1], (lamb_d, groups), jnp.float32) * s
    wgk = jax.random.normal(ks[2], (lamb_d, gk), jnp.float32) * (s * bn0)
    b0 = jax.random.normal(ks[3], (1, lamb_d), jnp.float32) * s
    bg = jax.random.normal(ks[4], (1, groups), jnp.float32) * s
    bgk = jax.random.normal(ks[5], (1, gk), jnp.float32) * (s * bn0)
    cw2 = jax.random.uniform(ks[6], (gs, num_clusters), dtype=jnp.float32)
    # flatten masks: (gs, K) -> (1, gs*K), feature index j = s*K + k
    j = jnp.arange(gs * K)
    colsel = (j[None, :] % K == jnp.arange(K)[:, None]).astype(MATMUL_DTYPE)    # (K, gs*K)
    rowmask = (j[None, :] // K == jnp.arange(gs)[:, None]).astype(MATMUL_DTYPE)  # (gs, gs*K)
    return {
        "w0": w0.astype(MATMUL_DTYPE),
        "wproj": jnp.concatenate([wg, wgk], axis=1).astype(MATMUL_DTYPE),   # fused attn+assign
        "bias": jnp.concatenate([b0, bg, bgk], axis=1),                     # (1, lamb_d+G+GK)
        "cw2": cw2,                                                         # (gs, K)
        "flatmask": jnp.concatenate([colsel, rowmask], axis=0),             # (K+gs, gs*K)
    }, gs


def make_fusion_params(key, video_hidden, audio_hidden, hidden, se_ratio, num_classes):
    ks = jax.random.split(key, 6)
    s = 0.02
    bn1 = 1.0 / math.sqrt(1.0 + BN_EPS)   # bn1 eval-mode scale folded into wf
    nc_pad = _round_up(max(num_classes, 1), LANE)
    wf = jax.random.normal(ks[0], (video_hidden + audio_hidden, hidden),
                           jnp.float32) * (s * bn1)
    ws = jax.random.normal(ks[1], (hidden, hidden // se_ratio), jnp.float32) * s
    we = jax.random.normal(ks[2], (hidden // se_ratio, hidden), jnp.float32) * s
    wc = jax.random.normal(ks[3], (hidden, num_classes), jnp.float32) * s
    wc_pad = jnp.zeros((hidden, nc_pad), jnp.float32).at[:, :num_classes].set(wc)
    bf = jax.random.normal(ks[4], (1, hidden), jnp.float32) * s
    bc = jax.random.normal(ks[5], (1, num_classes), jnp.float32) * s
    bc_pad = jnp.zeros((1, nc_pad), jnp.float32).at[:, :num_classes].set(bc)
    return {
        "wf": wf.astype(MATMUL_DTYPE),
        "ws": ws.astype(MATMUL_DTYPE),
        "we": we.astype(MATMUL_DTYPE),
        "wc": wc_pad.astype(MATMUL_DTYPE),
        "bias": jnp.concatenate([bf, bc_pad], axis=1),                      # (1, H+NCpad)
    }


if __name__ == "__main__":
    # Small config consistent with the module's __init__.
    cfg = dict(video_dim=32, audio_dim=16, num_clusters=8, lamb=2, groups=4,
               video_max_frames=8, audio_max_frames=4,
               hidden_size=64, se_ratio=4, num_classes=10)

    key = jax.random.PRNGKey(0)
    k_v, k_a, k_f, k_xv, k_xa = jax.random.split(key, 5)

    video_params, video_gs = make_nextvlad_params(
        k_v, cfg["video_dim"], cfg["num_clusters"], cfg["lamb"], cfg["groups"])
    audio_params, audio_gs = make_nextvlad_params(
        k_a, cfg["audio_dim"], cfg["num_clusters"], cfg["lamb"], cfg["groups"])
    video_hidden = video_gs * cfg["num_clusters"]   # 128
    audio_hidden = audio_gs * cfg["num_clusters"]   # 64
    fusion_params = make_fusion_params(
        k_f, video_hidden, audio_hidden, cfg["hidden_size"], cfg["se_ratio"],
        cfg["num_classes"])

    params = {"video": video_params, "audio": audio_params, "fusion": fusion_params,
              "gmask": make_group_masks(cfg["groups"], cfg["num_clusters"])}
    run_cfg = {"groups": cfg["groups"], "num_clusters": cfg["num_clusters"],
               "video_gs": video_gs, "audio_gs": audio_gs,
               "hidden_size": cfg["hidden_size"], "num_classes": cfg["num_classes"]}

    B = 2
    data = {
        "video_feature": jax.random.normal(
            k_xv, (B, cfg["video_max_frames"], cfg["video_dim"]), jnp.float32),
        "audio_feature": jax.random.normal(
            k_xa, (B, cfg["audio_max_frames"], cfg["audio_dim"]), jnp.float32),
    }

    out = fusion_model_forward(data, params, run_cfg)
    jax.block_until_ready(out["all_logits"])
    jax.block_until_ready(out["all_output"])

    assert out["all_logits"].shape == (B, cfg["num_classes"])
    assert out["all_output"].shape == (B, cfg["num_classes"])
    assert bool(jnp.all(jnp.isfinite(out["all_logits"])))

    # Validate against a pure-JAX f32 reference (bf16 activation casts + approx
    # reciprocal in the kernel -> allow a loose tolerance).
    ref_logits, ref_output = fusion_model_reference(data, params, run_cfg)
    err_logits = float(jnp.max(jnp.abs(out["all_logits"] - ref_logits)))
    err_output = float(jnp.max(jnp.abs(out["all_output"] - ref_output)))
    assert err_logits < 2e-2, f"logits mismatch: {err_logits}"
    assert err_output < 1e-2, f"output mismatch: {err_output}"

    print("KERNEL_OK")
</pallas_src>

<mosaic_0001>
module attributes {stable_mosaic.version = 11 : i64} {
  func.func @fusion_model_kernel(%arg0: i32, %arg1: memref<2x8x32xf32, #tpu.memory_space<vmem>>, %arg2: memref<2x4x16xf32, #tpu.memory_space<vmem>>, %arg3: memref<36x32xbf16, #tpu.memory_space<vmem>>, %arg4: memref<32x64xbf16, #tpu.memory_space<vmem>>, %arg5: memref<64x36xbf16, #tpu.memory_space<vmem>>, %arg6: memref<1x100xf32, #tpu.memory_space<vmem>>, %arg7: memref<16x8xf32, #tpu.memory_space<vmem>>, %arg8: memref<24x128xbf16, #tpu.memory_space<vmem>>, %arg9: memref<16x32xbf16, #tpu.memory_space<vmem>>, %arg10: memref<32x36xbf16, #tpu.memory_space<vmem>>, %arg11: memref<1x68xf32, #tpu.memory_space<vmem>>, %arg12: memref<8x8xf32, #tpu.memory_space<vmem>>, %arg13: memref<16x64xbf16, #tpu.memory_space<vmem>>, %arg14: memref<192x64xbf16, #tpu.memory_space<vmem>>, %arg15: memref<64x16xbf16, #tpu.memory_space<vmem>>, %arg16: memref<16x64xbf16, #tpu.memory_space<vmem>>, %arg17: memref<64x128xbf16, #tpu.memory_space<vmem>>, %arg18: memref<1x192xf32, #tpu.memory_space<vmem>>, %arg19: memref<2x128xf32, #tpu.memory_space<vmem>>, %arg20: memref<2x128xf32, #tpu.memory_space<vmem>>) attributes {dimension_semantics = [#tpu.dimension_semantics<parallel>], iteration_bounds = array<i64: 1>, scalar_prefetch = 0 : i64, scratch_operands = 0 : i64, tpu.core_type = #tpu.core_type<tc>, window_params = [{transform_indices = @transform_0, window_bounds = array<i64: 2, 8, 32>}, {transform_indices = @transform_1, window_bounds = array<i64: 2, 4, 16>}, {pipeline_mode = #tpu.pipeline_mode<synchronous>, transform_indices = @transform_2, window_bounds = array<i64: 36, 32>}, {pipeline_mode = #tpu.pipeline_mode<synchronous>, transform_indices = @transform_3, window_bounds = array<i64: 32, 64>}, {pipeline_mode = #tpu.pipeline_mode<synchronous>, transform_indices = @transform_4, window_bounds = array<i64: 64, 36>}, {pipeline_mode = #tpu.pipeline_mode<synchronous>, transform_indices = @transform_5, window_bounds = array<i64: 1, 100>}, {pipeline_mode = #tpu.pipeline_mode<synchronous>, transform_indices = @transform_6, window_bounds = array<i64: 16, 8>}, {pipeline_mode = #tpu.pipeline_mode<synchronous>, transform_indices = @transform_7, window_bounds = array<i64: 24, 128>}, {pipeline_mode = #tpu.pipeline_mode<synchronous>, transform_indices = @transform_8, window_bounds = array<i64: 16, 32>}, {pipeline_mode = #tpu.pipeline_mode<synchronous>, transform_indices = @transform_9, window_bounds = array<i64: 32, 36>}, {pipeline_mode = #tpu.pipeline_mode<synchronous>, transform_indices = @transform_10, window_bounds = array<i64: 1, 68>}, {pipeline_mode = #tpu.pipeline_mode<synchronous>, transform_indices = @transform_11, window_bounds = array<i64: 8, 8>}, {pipeline_mode = #tpu.pipeline_mode<synchronous>, transform_indices = @transform_12, window_bounds = array<i64: 16, 64>}, {pipeline_mode = #tpu.pipeline_mode<synchronous>, transform_indices = @transform_13, window_bounds = array<i64: 192, 64>}, {pipeline_mode = #tpu.pipeline_mode<synchronous>, transform_indices = @transform_14, window_bounds = array<i64: 64, 16>}, {pipeline_mode = #tpu.pipeline_mode<synchronous>, transform_indices = @transform_15, window_bounds = array<i64: 16, 64>}, {pipeline_mode = #tpu.pipeline_mode<synchronous>, transform_indices = @transform_16, window_bounds = array<i64: 64, 128>}, {pipeline_mode = #tpu.pipeline_mode<synchronous>, transform_indices = @transform_17, window_bounds = array<i64: 1, 192>}, {transform_indices = @transform_18, window_bounds = array<i64: 2, 128>}, {transform_indices = @transform_19, window_bounds = array<i64: 2, 128>}]} {
    %c0 = arith.constant 0 : index
    %c0_0 = arith.constant 0 : index
    %0 = vector.load %arg3[%c0, %c0_0] : memref<36x32xbf16, #tpu.memory_space<vmem>>, vector<36x32xbf16>
    %1 = vector.extract_strided_slice %0 {offsets = [0, 0], sizes = [32, 4], strides = [1, 1]} : vector<36x32xbf16> to vector<32x4xbf16>
    %2 = vector.extract_strided_slice %0 {offsets = [32, 0], sizes = [4, 32], strides = [1, 1]} : vector<36x32xbf16> to vector<4x32xbf16>
    %c0_1 = arith.constant 0 : index
    %c0_2 = arith.constant 0 : index
    %c0_3 = arith.constant 0 : index
    %3 = vector.load %arg1[%c0_1, %c0_2, %c0_3] : memref<2x8x32xf32, #tpu.memory_space<vmem>>, vector<2x8x32xf32>
    %c0_4 = arith.constant 0 : index
    %c0_5 = arith.constant 0 : index
    %4 = vector.load %arg4[%c0_4, %c0_5] : memref<32x64xbf16, #tpu.memory_space<vmem>>, vector<32x64xbf16>
    %c0_6 = arith.constant 0 : index
    %c0_7 = arith.constant 0 : index
    %5 = vector.load %arg5[%c0_6, %c0_7] : memref<64x36xbf16, #tpu.memory_space<vmem>>, vector<64x36xbf16>
    %c0_8 = arith.constant 0 : index
    %c0_9 = arith.constant 0 : index
    %6 = vector.load %arg6[%c0_8, %c0_9] : memref<1x100xf32, #tpu.memory_space<vmem>>, vector<1x100xf32>
    %c0_10 = arith.constant 0 : index
    %c0_11 = arith.constant 0 : index
    %7 = vector.load %arg7[%c0_10, %c0_11] : memref<16x8xf32, #tpu.memory_space<vmem>>, vector<16x8xf32>
    %c0_12 = arith.constant 0 : index
    %c0_13 = arith.constant 0 : index
    %8 = vector.load %arg8[%c0_12, %c0_13] : memref<24x128xbf16, #tpu.memory_space<vmem>>, vector<24x128xbf16>
    %9 = vector.extract_strided_slice %6 {offsets = [0, 0], sizes = [1, 64], strides = [1, 1]} : vector<1x100xf32> to vector<1x64xf32>
    %10 = vector.extract_strided_slice %6 {offsets = [0, 64], sizes = [1, 36], strides = [1, 1]} : vector<1x100xf32> to vector<1x36xf32>
    %11 = vector.extract_strided_slice %8 {offsets = [0, 0], sizes = [8, 128], strides = [1, 1]} : vector<24x128xbf16> to vector<8x128xbf16>
    %12 = vector.extract_strided_slice %8 {offsets = [8, 0], sizes = [16, 128], strides = [1, 1]} : vector<24x128xbf16> to vector<16x128xbf16>
    %13 = vector.shape_cast %3 : vector<2x8x32xf32> to vector<16x32xf32>
    %14 = arith.truncf %13 : vector<16x32xf32> to vector<16x32xbf16>
    %cst = arith.constant dense<0.000000e+00> : vector<16x64xf32>
    %15 = tpu.matmul %14, %4, %cst {dimension_numbers = #tpu.dot_dimension_numbers<[1], [0], [0], [1], [0, 0, 1, 1], [], []>} : vector<16x32xbf16>, vector<32x64xbf16>, vector<16x64xf32> -> vector<16x64xf32>
    %16 = vector.broadcast %9 : vector<1x64xf32> to vector<16x64xf32>
    %17 = arith.addf %15, %16 : vector<16x64xf32>
    %18 = arith.truncf %17 : vector<16x64xf32> to vector<16x64xbf16>
    %cst_14 = arith.constant dense<0.000000e+00> : vector<16x36xf32>
    %19 = tpu.matmul %18, %5, %cst_14 {dimension_numbers = #tpu.dot_dimension_numbers<[1], [0], [0], [1], [0, 0, 1, 1], [], []>} : vector<16x64xbf16>, vector<64x36xbf16>, vector<16x36xf32> -> vector<16x36xf32>
    %20 = vector.broadcast %10 : vector<1x36xf32> to vector<16x36xf32>
    %21 = arith.addf %19, %20 : vector<16x36xf32>
    %22 = vector.extract_strided_slice %21 {offsets = [0, 0], sizes = [16, 4], strides = [1, 1]} : vector<16x36xf32> to vector<16x4xf32>
    %23 = arith.negf %22 : vector<16x4xf32>
    %24 = math.exp %23 : vector<16x4xf32>
    %cst_15 = arith.constant 1.000000e+00 : f32
    %25 = vector.broadcast %cst_15 : f32 to vector<16x4xf32>
    %26 = arith.addf %25, %24 : vector<16x4xf32>
    %27 = arith.divf %25, %26 : vector<16x4xf32>
    %28 = vector.extract_strided_slice %21 {offsets = [0, 4], sizes = [16, 32], strides = [1, 1]} : vector<16x36xf32> to vector<16x32xf32>
    %cst_16 = arith.constant dense<0xFF800000> : vector<16xf32>
    %29 = vector.multi_reduction <maximumf>, %28, %cst_16 [1] : vector<16x32xf32> to vector<16xf32>
    %30 = vector.shape_cast %29 : vector<16xf32> to vector<16x1xf32>
    %31 = vector.broadcast %30 : vector<16x1xf32> to vector<16x32xf32>
    %32 = arith.subf %28, %31 : vector<16x32xf32>
    %33 = math.exp %32 : vector<16x32xf32>
    %34 = arith.truncf %33 : vector<16x32xf32> to vector<16x32xbf16>
    %cst_17 = arith.constant dense<0.000000e+00> : vector<16x4xf32>
    %35 = tpu.matmul %34, %1, %cst_17 {dimension_numbers = #tpu.dot_dimension_numbers<[1], [0], [0], [1], [0, 0, 1, 1], [], []>} : vector<16x32xbf16>, vector<32x4xbf16>, vector<16x4xf32> -> vector<16x4xf32>
    %cst_18 = arith.constant 1.000000e-30 : f32
    %36 = vector.broadcast %cst_18 : f32 to vector<16x4xf32>
    %37 = arith.maximumf %35, %36 : vector<16x4xf32>
    %38 = tpu.reciprocal %37 {approx = true} : vector<16x4xf32> -> vector<16x4xf32>
    %39 = arith.mulf %27, %38 : vector<16x4xf32>
    %40 = arith.truncf %39 : vector<16x4xf32> to vector<16x4xbf16>
    %cst_19 = arith.constant dense<0.000000e+00> : vector<16x32xf32>
    %41 = tpu.matmul %40, %2, %cst_19 {dimension_numbers = #tpu.dot_dimension_numbers<[1], [0], [0], [1], [0, 0, 1, 1], [], []>} : vector<16x4xbf16>, vector<4x32xbf16>, vector<16x32xf32> -> vector<16x32xf32>
    %42 = arith.mulf %33, %41 : vector<16x32xf32>
    %43 = tpu.transpose %17, [1, 0] : vector<16x64xf32> -> vector<64x16xf32>
    %cst_20 = arith.constant 0.000000e+00 : f32
    %44 = vector.broadcast %cst_20 : f32 to vector<16x8xf32>
    %cst_21 = arith.constant 0.000000e+00 : f32
    %45 = vector.broadcast %cst_21 : f32 to vector<1x8xf32>
    %46 = vector.extract_strided_slice %43 {offsets = [0, 0], sizes = [16, 8], strides = [1, 1]} : vector<64x16xf32> to vector<16x8xf32>
    %47 = vector.extract_strided_slice %42 {offsets = [0, 0], sizes = [8, 8], strides = [1, 1]} : vector<16x32xf32> to vector<8x8xf32>
    %48 = arith.truncf %46 : vector<16x8xf32> to vector<16x8xbf16>
    %49 = arith.truncf %47 : vector<8x8xf32> to vector<8x8xbf16>
    %cst_22 = arith.constant dense<0.000000e+00> : vector<16x8xf32>
    %50 = tpu.matmul %48, %49, %cst_22 {dimension_numbers = #tpu.dot_dimension_numbers<[1], [0], [0], [1], [0, 0, 1, 1], [], []>} : vector<16x8xbf16>, vector<8x8xbf16>, vector<16x8xf32> -> vector<16x8xf32>
    %51 = arith.addf %44, %50 : vector<16x8xf32>
    %cst_23 = arith.constant dense<0.000000e+00> : vector<8xf32>
    %52 = vector.multi_reduction <add>, %47, %cst_23 [0] : vector<8x8xf32> to vector<8xf32>
    %53 = vector.shape_cast %52 : vector<8xf32> to vector<1x8xf32>
    %54 = arith.addf %45, %53 : vector<1x8xf32>
    %55 = vector.extract_strided_slice %43 {offsets = [16, 0], sizes = [16, 8], strides = [1, 1]} : vector<64x16xf32> to vector<16x8xf32>
    %56 = vector.extract_strided_slice %42 {offsets = [0, 8], sizes = [8, 8], strides = [1, 1]} : vector<16x32xf32> to vector<8x8xf32>
    %57 = arith.truncf %55 : vector<16x8xf32> to vector<16x8xbf16>
    %58 = arith.truncf %56 : vector<8x8xf32> to vector<8x8xbf16>
    %cst_24 = arith.constant dense<0.000000e+00> : vector<16x8xf32>
    %59 = tpu.matmul %57, %58, %cst_24 {dimension_numbers = #tpu.dot_dimension_numbers<[1], [0], [0], [1], [0, 0, 1, 1], [], []>} : vector<16x8xbf16>, vector<8x8xbf16>, vector<16x8xf32> -> vector<16x8xf32>
    %60 = arith.addf %51, %59 : vector<16x8xf32>
    %cst_25 = arith.constant dense<0.000000e+00> : vector<8xf32>
    %61 = vector.multi_reduction <add>, %56, %cst_25 [0] : vector<8x8xf32> to vector<8xf32>
    %62 = vector.shape_cast %61 : vector<8xf32> to vector<1x8xf32>
    %63 = arith.addf %54, %62 : vector<1x8xf32>
    %64 = vector.extract_strided_slice %43 {offsets = [32, 0], sizes = [16, 8], strides = [1, 1]} : vector<64x16xf32> to vector<16x8xf32>
    %65 = vector.extract_strided_slice %42 {offsets = [0, 16], sizes = [8, 8], strides = [1, 1]} : vector<16x32xf32> to vector<8x8xf32>
    %66 = arith.truncf %64 : vector<16x8xf32> to vector<16x8xbf16>
    %67 = arith.truncf %65 : vector<8x8xf32> to vector<8x8xbf16>
    %cst_26 = arith.constant dense<0.000000e+00> : vector<16x8xf32>
    %68 = tpu.matmul %66, %67, %cst_26 {dimension_numbers = #tpu.dot_dimension_numbers<[1], [0], [0], [1], [0, 0, 1, 1], [], []>} : vector<16x8xbf16>, vector<8x8xbf16>, vector<16x8xf32> -> vector<16x8xf32>
    %69 = arith.addf %60, %68 : vector<16x8xf32>
    %cst_27 = arith.constant dense<0.000000e+00> : vector<8xf32>
    %70 = vector.multi_reduction <add>, %65, %cst_27 [0] : vector<8x8xf32> to vector<8xf32>
    %71 = vector.shape_cast %70 : vector<8xf32> to vector<1x8xf32>
    %72 = arith.addf %63, %71 : vector<1x8xf32>
    %73 = vector.extract_strided_slice %43 {offsets = [48, 0], sizes = [16, 8], strides = [1, 1]} : vector<64x16xf32> to vector<16x8xf32>
    %74 = vector.extract_strided_slice %42 {offsets = [0, 24], sizes = [8, 8], strides = [1, 1]} : vector<16x32xf32> to vector<8x8xf32>
    %75 = arith.truncf %73 : vector<16x8xf32> to vector<16x8xbf16>
    %76 = arith.truncf %74 : vector<8x8xf32> to vector<8x8xbf16>
    %cst_28 = arith.constant dense<0.000000e+00> : vector<16x8xf32>
    %77 = tpu.matmul %75, %76, %cst_28 {dimension_numbers = #tpu.dot_dimension_numbers<[1], [0], [0], [1], [0, 0, 1, 1], [], []>} : vector<16x8xbf16>, vector<8x8xbf16>, vector<16x8xf32> -> vector<16x8xf32>
    %78 = arith.addf %69, %77 : vector<16x8xf32>
    %cst_29 = arith.constant dense<0.000000e+00> : vector<8xf32>
    %79 = vector.multi_reduction <add>, %74, %cst_29 [0] : vector<8x8xf32> to vector<8xf32>
    %80 = vector.shape_cast %79 : vector<8xf32> to vector<1x8xf32>
    %81 = arith.addf %72, %80 : vector<1x8xf32>
    %82 = vector.broadcast %81 : vector<1x8xf32> to vector<16x8xf32>
    %83 = arith.mulf %82, %7 : vector<16x8xf32>
    %84 = arith.subf %78, %83 : vector<16x8xf32>
    %85 = arith.mulf %84, %84 : vector<16x8xf32>
    %cst_30 = arith.constant dense<0.000000e+00> : vector<8xf32>
    %86 = vector.multi_reduction <add>, %85, %cst_30 [0] : vector<16x8xf32> to vector<8xf32>
    %87 = vector.shape_cast %86 : vector<8xf32> to vector<1x8xf32>
    %cst_31 = arith.constant 1.000000e-24 : f32
    %88 = vector.broadcast %cst_31 : f32 to vector<1x8xf32>
    %89 = arith.maximumf %87, %88 : vector<1x8xf32>
    %90 = math.rsqrt %89 : vector<1x8xf32>
    %91 = vector.broadcast %90 : vector<1x8xf32> to vector<16x8xf32>
    %92 = arith.mulf %84, %91 : vector<16x8xf32>
    %93 = arith.truncf %92 : vector<16x8xf32> to vector<16x8xbf16>
    %cst_32 = arith.constant dense<0.000000e+00> : vector<16x128xf32>
    %94 = tpu.matmul %93, %11, %cst_32 {dimension_numbers = #tpu.dot_dimension_numbers<[1], [0], [0], [1], [0, 0, 1, 1], [], []>} : vector<16x8xbf16>, vector<8x128xbf16>, vector<16x128xf32> -> vector<16x128xf32>
    %95 = arith.extf %12 : vector<16x128xbf16> to vector<16x128xf32>
    %96 = arith.mulf %94, %95 : vector<16x128xf32>
    %cst_33 = arith.constant dense<0.000000e+00> : vector<128xf32>
    %97 = vector.multi_reduction <add>, %96, %cst_33 [0] : vector<16x128xf32> to vector<128xf32>
    %98 = vector.shape_cast %97 : vector<128xf32> to vector<1x128xf32>
    %cst_34 = arith.constant 0.000000e+00 : f32
    %99 = vector.broadcast %cst_34 : f32 to vector<16x8xf32>
    %cst_35 = arith.constant 0.000000e+00 : f32
    %100 = vector.broadcast %cst_35 : f32 to vector<1x8xf32>
    %101 = vector.extract_strided_slice %43 {offsets = [0, 8], sizes = [16, 8], strides = [1, 1]} : vector<64x16xf32> to vector<16x8xf32>
    %102 = vector.extract_strided_slice %42 {offsets = [8, 0], sizes = [8, 8], strides = [1, 1]} : vector<16x32xf32> to vector<8x8xf32>
    %103 = arith.truncf %101 : vector<16x8xf32> to vector<16x8xbf16>
    %104 = arith.truncf %102 : vector<8x8xf32> to vector<8x8xbf16>
    %cst_36 = arith.constant dense<0.000000e+00> : vector<16x8xf32>
    %105 = tpu.matmul %103, %104, %cst_36 {dimension_numbers = #tpu.dot_dimension_numbers<[1], [0], [0], [1], [0, 0, 1, 1], [], []>} : vector<16x8xbf16>, vector<8x8xbf16>, vector<16x8xf32> -> vector<16x8xf32>
    %106 = arith.addf %99, %105 : vector<16x8xf32>
    %cst_37 = arith.constant dense<0.000000e+00> : vector<8xf32>
    %107 = vector.multi_reduction <add>, %102, %cst_37 [0] : vector<8x8xf32> to vector<8xf32>
    %108 = vector.shape_cast %107 : vector<8xf32> to vector<1x8xf32>
    %109 = arith.addf %100, %108 : vector<1x8xf32>
    %110 = vector.extract_strided_slice %43 {offsets = [16, 8], sizes = [16, 8], strides = [1, 1]} : vector<64x16xf32> to vector<16x8xf32>
    %111 = vector.extract_strided_slice %42 {offsets = [8, 8], sizes = [8, 8], strides = [1, 1]} : vector<16x32xf32> to vector<8x8xf32>
    %112 = arith.truncf %110 : vector<16x8xf32> to vector<16x8xbf16>
    %113 = arith.truncf %111 : vector<8x8xf32> to vector<8x8xbf16>
    %cst_38 = arith.constant dense<0.000000e+00> : vector<16x8xf32>
    %114 = tpu.matmul %112, %113, %cst_38 {dimension_numbers = #tpu.dot_dimension_numbers<[1], [0], [0], [1], [0, 0, 1, 1], [], []>} : vector<16x8xbf16>, vector<8x8xbf16>, vector<16x8xf32> -> vector<16x8xf32>
    %115 = arith.addf %106, %114 : vector<16x8xf32>
    %cst_39 = arith.constant dense<0.000000e+00> : vector<8xf32>
    %116 = vector.multi_reduction <add>, %111, %cst_39 [0] : vector<8x8xf32> to vector<8xf32>
    %117 = vector.shape_cast %116 : vector<8xf32> to vector<1x8xf32>
    %118 = arith.addf %109, %117 : vector<1x8xf32>
    %119 = vector.extract_strided_slice %43 {offsets = [32, 8], sizes = [16, 8], strides = [1, 1]} : vector<64x16xf32> to vector<16x8xf32>
    %120 = vector.extract_strided_slice %42 {offsets = [8, 16], sizes = [8, 8], strides = [1, 1]} : vector<16x32xf32> to vector<8x8xf32>
    %121 = arith.truncf %119 : vector<16x8xf32> to vector<16x8xbf16>
    %122 = arith.truncf %120 : vector<8x8xf32> to vector<8x8xbf16>
    %cst_40 = arith.constant dense<0.000000e+00> : vector<16x8xf32>
    %123 = tpu.matmul %121, %122, %cst_40 {dimension_numbers = #tpu.dot_dimension_numbers<[1], [0], [0], [1], [0, 0, 1, 1], [], []>} : vector<16x8xbf16>, vector<8x8xbf16>, vector<16x8xf32> -> vector<16x8xf32>
    %124 = arith.addf %115, %123 : vector<16x8xf32>
    %cst_41 = arith.constant dense<0.000000e+00> : vector<8xf32>
    %125 = vector.multi_reduction <add>, %120, %cst_41 [0] : vector<8x8xf32> to vector<8xf32>
    %126 = vector.shape_cast %125 : vector<8xf32> to vector<1x8xf32>
    %127 = arith.addf %118, %126 : vector<1x8xf32>
    %128 = vector.extract_strided_slice %43 {offsets = [48, 8], sizes = [16, 8], strides = [1, 1]} : vector<64x16xf32> to vector<16x8xf32>
    %129 = vector.extract_strided_slice %42 {offsets = [8, 24], sizes = [8, 8], strides = [1, 1]} : vector<16x32xf32> to vector<8x8xf32>
    %130 = arith.truncf %128 : vector<16x8xf32> to vector<16x8xbf16>
    %131 = arith.truncf %129 : vector<8x8xf32> to vector<8x8xbf16>
    %cst_42 = arith.constant dense<0.000000e+00> : vector<16x8xf32>
    %132 = tpu.matmul %130, %131, %cst_42 {dimension_numbers = #tpu.dot_dimension_numbers<[1], [0], [0], [1], [0, 0, 1, 1], [], []>} : vector<16x8xbf16>, vector<8x8xbf16>, vector<16x8xf32> -> vector<16x8xf32>
    %133 = arith.addf %124, %132 : vector<16x8xf32>
    %cst_43 = arith.constant dense<0.000000e+00> : vector<8xf32>
    %134 = vector.multi_reduction <add>, %129, %cst_43 [0] : vector<8x8xf32> to vector<8xf32>
    %135 = vector.shape_cast %134 : vector<8xf32> to vector<1x8xf32>
    %136 = arith.addf %127, %135 : vector<1x8xf32>
    %137 = vector.broadcast %136 : vector<1x8xf32> to vector<16x8xf32>
    %138 = arith.mulf %137, %7 : vector<16x8xf32>
    %139 = arith.subf %133, %138 : vector<16x8xf32>
    %140 = arith.mulf %139, %139 : vector<16x8xf32>
    %cst_44 = arith.constant dense<0.000000e+00> : vector<8xf32>
    %141 = vector.multi_reduction <add>, %140, %cst_44 [0] : vector<16x8xf32> to vector<8xf32>
    %142 = vector.shape_cast %141 : vector<8xf32> to vector<1x8xf32>
    %cst_45 = arith.constant 1.000000e-24 : f32
    %143 = vector.broadcast %cst_45 : f32 to vector<1x8xf32>
    %144 = arith.maximumf %142, %143 : vector<1x8xf32>
    %145 = math.rsqrt %144 : vector<1x8xf32>
    %146 = vector.broadcast %145 : vector<1x8xf32> to vector<16x8xf32>
    %147 = arith.mulf %139, %146 : vector<16x8xf32>
    %148 = arith.truncf %147 : vector<16x8xf32> to vector<16x8xbf16>
    %cst_46 = arith.constant dense<0.000000e+00> : vector<16x128xf32>
    %149 = tpu.matmul %148, %11, %cst_46 {dimension_numbers = #tpu.dot_dimension_numbers<[1], [0], [0], [1], [0, 0, 1, 1], [], []>} : vector<16x8xbf16>, vector<8x128xbf16>, vector<16x128xf32> -> vector<16x128xf32>
    %150 = arith.extf %12 : vector<16x128xbf16> to vector<16x128xf32>
    %151 = arith.mulf %149, %150 : vector<16x128xf32>
    %cst_47 = arith.constant dense<0.000000e+00> : vector<128xf32>
    %152 = vector.multi_reduction <add>, %151, %cst_47 [0] : vector<16x128xf32> to vector<128xf32>
    %153 = vector.shape_cast %152 : vector<128xf32> to vector<1x128xf32>
    %154 = tpu.concatenate %98, %153 in 0 : vector<1x128xf32>, vector<1x128xf32> -> vector<2x128xf32>
    %c0_48 = arith.constant 0 : index
    %c0_49 = arith.constant 0 : index
    %c0_50 = arith.constant 0 : index
    %155 = vector.load %arg2[%c0_48, %c0_49, %c0_50] : memref<2x4x16xf32, #tpu.memory_space<vmem>>, vector<2x4x16xf32>
    %c0_51 = arith.constant 0 : index
    %c0_52 = arith.constant 0 : index
    %156 = vector.load %arg9[%c0_51, %c0_52] : memref<16x32xbf16, #tpu.memory_space<vmem>>, vector<16x32xbf16>
    %c0_53 = arith.constant 0 : index
    %c0_54 = arith.constant 0 : index
    %157 = vector.load %arg10[%c0_53, %c0_54] : memref<32x36xbf16, #tpu.memory_space<vmem>>, vector<32x36xbf16>
    %c0_55 = arith.constant 0 : index
    %c0_56 = arith.constant 0 : index
    %158 = vector.load %arg11[%c0_55, %c0_56] : memref<1x68xf32, #tpu.memory_space<vmem>>, vector<1x68xf32>
    %c0_57 = arith.constant 0 : index
    %c0_58 = arith.constant 0 : index
    %159 = vector.load %arg12[%c0_57, %c0_58] : memref<8x8xf32, #tpu.memory_space<vmem>>, vector<8x8xf32>
    %c0_59 = arith.constant 0 : index
    %c0_60 = arith.constant 0 : index
    %160 = vector.load %arg13[%c0_59, %c0_60] : memref<16x64xbf16, #tpu.memory_space<vmem>>, vector<16x64xbf16>
    %161 = vector.extract_strided_slice %158 {offsets = [0, 0], sizes = [1, 32], strides = [1, 1]} : vector<1x68xf32> to vector<1x32xf32>
    %162 = vector.extract_strided_slice %158 {offsets = [0, 32], sizes = [1, 36], strides = [1, 1]} : vector<1x68xf32> to vector<1x36xf32>
    %163 = vector.extract_strided_slice %160 {offsets = [0, 0], sizes = [8, 64], strides = [1, 1]} : vector<16x64xbf16> to vector<8x64xbf16>
    %164 = vector.extract_strided_slice %160 {offsets = [8, 0], sizes = [8, 64], strides = [1, 1]} : vector<16x64xbf16> to vector<8x64xbf16>
    %165 = vector.shape_cast %155 : vector<2x4x16xf32> to vector<8x16xf32>
    %166 = arith.truncf %165 : vector<8x16xf32> to vector<8x16xbf16>
    %cst_61 = arith.constant dense<0.000000e+00> : vector<8x32xf32>
    %167 = tpu.matmul %166, %156, %cst_61 {dimension_numbers = #tpu.dot_dimension_numbers<[1], [0], [0], [1], [0, 0, 1, 1], [], []>} : vector<8x16xbf16>, vector<16x32xbf16>, vector<8x32xf32> -> vector<8x32xf32>
    %168 = vector.broadcast %161 : vector<1x32xf32> to vector<8x32xf32>
    %169 = arith.addf %167, %168 : vector<8x32xf32>
    %170 = arith.truncf %169 : vector<8x32xf32> to vector<8x32xbf16>
    %cst_62 = arith.constant dense<0.000000e+00> : vector<8x36xf32>
    %171 = tpu.matmul %170, %157, %cst_62 {dimension_numbers = #tpu.dot_dimension_numbers<[1], [0], [0], [1], [0, 0, 1, 1], [], []>} : vector<8x32xbf16>, vector<32x36xbf16>, vector<8x36xf32> -> vector<8x36xf32>
    %172 = vector.broadcast %162 : vector<1x36xf32> to vector<8x36xf32>
    %173 = arith.addf %171, %172 : vector<8x36xf32>
    %174 = vector.extract_strided_slice %173 {offsets = [0, 0], sizes = [8, 4], strides = [1, 1]} : vector<8x36xf32> to vector<8x4xf32>
    %175 = arith.negf %174 : vector<8x4xf32>
    %176 = math.exp %175 : vector<8x4xf32>
    %cst_63 = arith.constant 1.000000e+00 : f32
    %177 = vector.broadcast %cst_63 : f32 to vector<8x4xf32>
    %178 = arith.addf %177, %176 : vector<8x4xf32>
    %179 = arith.divf %177, %178 : vector<8x4xf32>
    %180 = vector.extract_strided_slice %173 {offsets = [0, 4], sizes = [8, 32], strides = [1, 1]} : vector<8x36xf32> to vector<8x32xf32>
    %cst_64 = arith.constant dense<0xFF800000> : vector<8xf32>
    %181 = vector.multi_reduction <maximumf>, %180, %cst_64 [1] : vector<8x32xf32> to vector<8xf32>
    %182 = vector.shape_cast %181 : vector<8xf32> to vector<8x1xf32>
    %183 = vector.broadcast %182 : vector<8x1xf32> to vector<8x32xf32>
    %184 = arith.subf %180, %183 : vector<8x32xf32>
    %185 = math.exp %184 : vector<8x32xf32>
    %186 = arith.truncf %185 : vector<8x32xf32> to vector<8x32xbf16>
    %cst_65 = arith.constant dense<0.000000e+00> : vector<8x4xf32>
    %187 = tpu.matmul %186, %1, %cst_65 {dimension_numbers = #tpu.dot_dimension_numbers<[1], [0], [0], [1], [0, 0, 1, 1], [], []>} : vector<8x32xbf16>, vector<32x4xbf16>, vector<8x4xf32> -> vector<8x4xf32>
    %cst_66 = arith.constant 1.000000e-30 : f32
    %188 = vector.broadcast %cst_66 : f32 to vector<8x4xf32>
    %189 = arith.maximumf %187, %188 : vector<8x4xf32>
    %190 = tpu.reciprocal %189 {approx = true} : vector<8x4xf32> -> vector<8x4xf32>
    %191 = arith.mulf %179, %190 : vector<8x4xf32>
    %192 = arith.truncf %191 : vector<8x4xf32> to vector<8x4xbf16>
    %cst_67 = arith.constant dense<0.000000e+00> : vector<8x32xf32>
    %193 = tpu.matmul %192, %2, %cst_67 {dimension_numbers = #tpu.dot_dimension_numbers<[1], [0], [0], [1], [0, 0, 1, 1], [], []>} : vector<8x4xbf16>, vector<4x32xbf16>, vector<8x32xf32> -> vector<8x32xf32>
    %194 = arith.mulf %185, %193 : vector<8x32xf32>
    %195 = tpu.transpose %169, [1, 0] : vector<8x32xf32> -> vector<32x8xf32>
    %cst_68 = arith.constant 0.000000e+00 : f32
    %196 = vector.broadcast %cst_68 : f32 to vector<8x8xf32>
    %cst_69 = arith.constant 0.000000e+00 : f32
    %197 = vector.broadcast %cst_69 : f32 to vector<1x8xf32>
    %198 = vector.extract_strided_slice %195 {offsets = [0, 0], sizes = [8, 4], strides = [1, 1]} : vector<32x8xf32> to vector<8x4xf32>
    %199 = vector.extract_strided_slice %194 {offsets = [0, 0], sizes = [4, 8], strides = [1, 1]} : vector<8x32xf32> to vector<4x8xf32>
    %200 = arith.truncf %198 : vector<8x4xf32> to vector<8x4xbf16>
    %201 = arith.truncf %199 : vector<4x8xf32> to vector<4x8xbf16>
    %cst_70 = arith.constant dense<0.000000e+00> : vector<8x8xf32>
    %202 = tpu.matmul %200, %201, %cst_70 {dimension_numbers = #tpu.dot_dimension_numbers<[1], [0], [0], [1], [0, 0, 1, 1], [], []>} : vector<8x4xbf16>, vector<4x8xbf16>, vector<8x8xf32> -> vector<8x8xf32>
    %203 = arith.addf %196, %202 : vector<8x8xf32>
    %cst_71 = arith.constant dense<0.000000e+00> : vector<8xf32>
    %204 = vector.multi_reduction <add>, %199, %cst_71 [0] : vector<4x8xf32> to vector<8xf32>
    %205 = vector.shape_cast %204 : vector<8xf32> to vector<1x8xf32>
    %206 = arith.addf %197, %205 : vector<1x8xf32>
    %207 = vector.extract_strided_slice %195 {offsets = [8, 0], sizes = [8, 4], strides = [1, 1]} : vector<32x8xf32> to vector<8x4xf32>
    %208 = vector.extract_strided_slice %194 {offsets = [0, 8], sizes = [4, 8], strides = [1, 1]} : vector<8x32xf32> to vector<4x8xf32>
    %209 = arith.truncf %207 : vector<8x4xf32> to vector<8x4xbf16>
    %210 = arith.truncf %208 : vector<4x8xf32> to vector<4x8xbf16>
    %cst_72 = arith.constant dense<0.000000e+00> : vector<8x8xf32>
    %211 = tpu.matmul %209, %210, %cst_72 {dimension_numbers = #tpu.dot_dimension_numbers<[1], [0], [0], [1], [0, 0, 1, 1], [], []>} : vector<8x4xbf16>, vector<4x8xbf16>, vector<8x8xf32> -> vector<8x8xf32>
    %212 = arith.addf %203, %211 : vector<8x8xf32>
    %cst_73 = arith.constant dense<0.000000e+00> : vector<8xf32>
    %213 = vector.multi_reduction <add>, %208, %cst_73 [0] : vector<4x8xf32> to vector<8xf32>
    %214 = vector.shape_cast %213 : vector<8xf32> to vector<1x8xf32>
    %215 = arith.addf %206, %214 : vector<1x8xf32>
    %216 = vector.extract_strided_slice %195 {offsets = [16, 0], sizes = [8, 4], strides = [1, 1]} : vector<32x8xf32> to vector<8x4xf32>
    %217 = vector.extract_strided_slice %194 {offsets = [0, 16], sizes = [4, 8], strides = [1, 1]} : vector<8x32xf32> to vector<4x8xf32>
    %218 = arith.truncf %216 : vector<8x4xf32> to vector<8x4xbf16>
    %219 = arith.truncf %217 : vector<4x8xf32> to vector<4x8xbf16>
    %cst_74 = arith.constant dense<0.000000e+00> : vector<8x8xf32>
    %220 = tpu.matmul %218, %219, %cst_74 {dimension_numbers = #tpu.dot_dimension_numbers<[1], [0], [0], [1], [0, 0, 1, 1], [], []>} : vector<8x4xbf16>, vector<4x8xbf16>, vector<8x8xf32> -> vector<8x8xf32>
    %221 = arith.addf %212, %220 : vector<8x8xf32>
    %cst_75 = arith.constant dense<0.000000e+00> : vector<8xf32>
    %222 = vector.multi_reduction <add>, %217, %cst_75 [0] : vector<4x8xf32> to vector<8xf32>
    %223 = vector.shape_cast %222 : vector<8xf32> to vector<1x8xf32>
    %224 = arith.addf %215, %223 : vector<1x8xf32>
    %225 = vector.extract_strided_slice %195 {offsets = [24, 0], sizes = [8, 4], strides = [1, 1]} : vector<32x8xf32> to vector<8x4xf32>
    %226 = vector.extract_strided_slice %194 {offsets = [0, 24], sizes = [4, 8], strides = [1, 1]} : vector<8x32xf32> to vector<4x8xf32>
    %227 = arith.truncf %225 : vector<8x4xf32> to vector<8x4xbf16>
    %228 = arith.truncf %226 : vector<4x8xf32> to vector<4x8xbf16>
    %cst_76 = arith.constant dense<0.000000e+00> : vector<8x8xf32>
    %229 = tpu.matmul %227, %228, %cst_76 {dimension_numbers = #tpu.dot_dimension_numbers<[1], [0], [0], [1], [0, 0, 1, 1], [], []>} : vector<8x4xbf16>, vector<4x8xbf16>, vector<8x8xf32> -> vector<8x8xf32>
    %230 = arith.addf %221, %229 : vector<8x8xf32>
    %cst_77 = arith.constant dense<0.000000e+00> : vector<8xf32>
    %231 = vector.multi_reduction <add>, %226, %cst_77 [0] : vector<4x8xf32> to vector<8xf32>
    %232 = vector.shape_cast %231 : vector<8xf32> to vector<1x8xf32>
    %233 = arith.addf %224, %232 : vector<1x8xf32>
    %234 = vector.broadcast %233 : vector<1x8xf32> to vector<8x8xf32>
    %235 = arith.mulf %234, %159 : vector<8x8xf32>
    %236 = arith.subf %230, %235 : vector<8x8xf32>
    %237 = arith.mulf %236, %236 : vector<8x8xf32>
    %cst_78 = arith.constant dense<0.000000e+00> : vector<8xf32>
    %238 = vector.multi_reduction <add>, %237, %cst_78 [0] : vector<8x8xf32> to vector<8xf32>
    %239 = vector.shape_cast %238 : vector<8xf32> to vector<1x8xf32>
    %cst_79 = arith.constant 1.000000e-24 : f32
    %240 = vector.broadcast %cst_79 : f32 to vector<1x8xf32>
    %241 = arith.maximumf %239, %240 : vector<1x8xf32>
    %242 = math.rsqrt %241 : vector<1x8xf32>
    %243 = vector.broadcast %242 : vector<1x8xf32> to vector<8x8xf32>
    %244 = arith.mulf %236, %243 : vector<8x8xf32>
    %245 = arith.truncf %244 : vector<8x8xf32> to vector<8x8xbf16>
    %cst_80 = arith.constant dense<0.000000e+00> : vector<8x64xf32>
    %246 = tpu.matmul %245, %163, %cst_80 {dimension_numbers = #tpu.dot_dimension_numbers<[1], [0], [0], [1], [0, 0, 1, 1], [], []>} : vector<8x8xbf16>, vector<8x64xbf16>, vector<8x64xf32> -> vector<8x64xf32>
    %247 = arith.extf %164 : vector<8x64xbf16> to vector<8x64xf32>
    %248 = arith.mulf %246, %247 : vector<8x64xf32>
    %cst_81 = arith.constant dense<0.000000e+00> : vector<64xf32>
    %249 = vector.multi_reduction <add>, %248, %cst_81 [0] : vector<8x64xf32> to vector<64xf32>
    %250 = vector.shape_cast %249 : vector<64xf32> to vector<1x64xf32>
    %cst_82 = arith.constant 0.000000e+00 : f32
    %251 = vector.broadcast %cst_82 : f32 to vector<8x8xf32>
    %cst_83 = arith.constant 0.000000e+00 : f32
    %252 = vector.broadcast %cst_83 : f32 to vector<1x8xf32>
    %253 = vector.extract_strided_slice %195 {offsets = [0, 4], sizes = [8, 4], strides = [1, 1]} : vector<32x8xf32> to vector<8x4xf32>
    %254 = vector.extract_strided_slice %194 {offsets = [4, 0], sizes = [4, 8], strides = [1, 1]} : vector<8x32xf32> to vector<4x8xf32>
    %255 = arith.truncf %253 : vector<8x4xf32> to vector<8x4xbf16>
    %256 = arith.truncf %254 : vector<4x8xf32> to vector<4x8xbf16>
    %cst_84 = arith.constant dense<0.000000e+00> : vector<8x8xf32>
    %257 = tpu.matmul %255, %256, %cst_84 {dimension_numbers = #tpu.dot_dimension_numbers<[1], [0], [0], [1], [0, 0, 1, 1], [], []>} : vector<8x4xbf16>, vector<4x8xbf16>, vector<8x8xf32> -> vector<8x8xf32>
    %258 = arith.addf %251, %257 : vector<8x8xf32>
    %cst_85 = arith.constant dense<0.000000e+00> : vector<8xf32>
    %259 = vector.multi_reduction <add>, %254, %cst_85 [0] : vector<4x8xf32> to vector<8xf32>
    %260 = vector.shape_cast %259 : vector<8xf32> to vector<1x8xf32>
    %261 = arith.addf %252, %260 : vector<1x8xf32>
    %262 = vector.extract_strided_slice %195 {offsets = [8, 4], sizes = [8, 4], strides = [1, 1]} : vector<32x8xf32> to vector<8x4xf32>
    %263 = vector.extract_strided_slice %194 {offsets = [4, 8], sizes = [4, 8], strides = [1, 1]} : vector<8x32xf32> to vector<4x8xf32>
    %264 = arith.truncf %262 : vector<8x4xf32> to vector<8x4xbf16>
    %265 = arith.truncf %263 : vector<4x8xf32> to vector<4x8xbf16>
    %cst_86 = arith.constant dense<0.000000e+00> : vector<8x8xf32>
    %266 = tpu.matmul %264, %265, %cst_86 {dimension_numbers = #tpu.dot_dimension_numbers<[1], [0], [0], [1], [0, 0, 1, 1], [], []>} : vector<8x4xbf16>, vector<4x8xbf16>, vector<8x8xf32> -> vector<8x8xf32>
    %267 = arith.addf %258, %266 : vector<8x8xf32>
    %cst_87 = arith.constant dense<0.000000e+00> : vector<8xf32>
    %268 = vector.multi_reduction <add>, %263, %cst_87 [0] : vector<4x8xf32> to vector<8xf32>
    %269 = vector.shape_cast %268 : vector<8xf32> to vector<1x8xf32>
    %270 = arith.addf %261, %269 : vector<1x8xf32>
    %271 = vector.extract_strided_slice %195 {offsets = [16, 4], sizes = [8, 4], strides = [1, 1]} : vector<32x8xf32> to vector<8x4xf32>
    %272 = vector.extract_strided_slice %194 {offsets = [4, 16], sizes = [4, 8], strides = [1, 1]} : vector<8x32xf32> to vector<4x8xf32>
    %273 = arith.truncf %271 : vector<8x4xf32> to vector<8x4xbf16>
    %274 = arith.truncf %272 : vector<4x8xf32> to vector<4x8xbf16>
    %cst_88 = arith.constant dense<0.000000e+00> : vector<8x8xf32>
    %275 = tpu.matmul %273, %274, %cst_88 {dimension_numbers = #tpu.dot_dimension_numbers<[1], [0], [0], [1], [0, 0, 1, 1], [], []>} : vector<8x4xbf16>, vector<4x8xbf16>, vector<8x8xf32> -> vector<8x8xf32>
    %276 = arith.addf %267, %275 : vector<8x8xf32>
    %cst_89 = arith.constant dense<0.000000e+00> : vector<8xf32>
    %277 = vector.multi_reduction <add>, %272, %cst_89 [0] : vector<4x8xf32> to vector<8xf32>
    %278 = vector.shape_cast %277 : vector<8xf32> to vector<1x8xf32>
    %279 = arith.addf %270, %278 : vector<1x8xf32>
    %280 = vector.extract_strided_slice %195 {offsets = [24, 4], sizes = [8, 4], strides = [1, 1]} : vector<32x8xf32> to vector<8x4xf32>
    %281 = vector.extract_strided_slice %194 {offsets = [4, 24], sizes = [4, 8], strides = [1, 1]} : vector<8x32xf32> to vector<4x8xf32>
    %282 = arith.truncf %280 : vector<8x4xf32> to vector<8x4xbf16>
    %283 = arith.truncf %281 : vector<4x8xf32> to vector<4x8xbf16>
    %cst_90 = arith.constant dense<0.000000e+00> : vector<8x8xf32>
    %284 = tpu.matmul %282, %283, %cst_90 {dimension_numbers = #tpu.dot_dimension_numbers<[1], [0], [0], [1], [0, 0, 1, 1], [], []>} : vector<8x4xbf16>, vector<4x8xbf16>, vector<8x8xf32> -> vector<8x8xf32>
    %285 = arith.addf %276, %284 : vector<8x8xf32>
    %cst_91 = arith.constant dense<0.000000e+00> : vector<8xf32>
    %286 = vector.multi_reduction <add>, %281, %cst_91 [0] : vector<4x8xf32> to vector<8xf32>
    %287 = vector.shape_cast %286 : vector<8xf32> to vector<1x8xf32>
    %288 = arith.addf %279, %287 : vector<1x8xf32>
    %289 = vector.broadcast %288 : vector<1x8xf32> to vector<8x8xf32>
    %290 = arith.mulf %289, %159 : vector<8x8xf32>
    %291 = arith.subf %285, %290 : vector<8x8xf32>
    %292 = arith.mulf %291, %291 : vector<8x8xf32>
    %cst_92 = arith.constant dense<0.000000e+00> : vector<8xf32>
    %293 = vector.multi_reduction <add>, %292, %cst_92 [0] : vector<8x8xf32> to vector<8xf32>
    %294 = vector.shape_cast %293 : vector<8xf32> to vector<1x8xf32>
    %cst_93 = arith.constant 1.000000e-24 : f32
    %295 = vector.broadcast %cst_93 : f32 to vector<1x8xf32>
    %296 = arith.maximumf %294, %295 : vector<1x8xf32>
    %297 = math.rsqrt %296 : vector<1x8xf32>
    %298 = vector.broadcast %297 : vector<1x8xf32> to vector<8x8xf32>
    %299 = arith.mulf %291, %298 : vector<8x8xf32>
    %300 = arith.truncf %299 : vector<8x8xf32> to vector<8x8xbf16>
    %cst_94 = arith.constant dense<0.000000e+00> : vector<8x64xf32>
    %301 = tpu.matmul %300, %163, %cst_94 {dimension_numbers = #tpu.dot_dimension_numbers<[1], [0], [0], [1], [0, 0, 1, 1], [], []>} : vector<8x8xbf16>, vector<8x64xbf16>, vector<8x64xf32> -> vector<8x64xf32>
    %302 = arith.extf %164 : vector<8x64xbf16> to vector<8x64xf32>
    %303 = arith.mulf %301, %302 : vector<8x64xf32>
    %cst_95 = arith.constant dense<0.000000e+00> : vector<64xf32>
    %304 = vector.multi_reduction <add>, %303, %cst_95 [0] : vector<8x64xf32> to vector<64xf32>
    %305 = vector.shape_cast %304 : vector<64xf32> to vector<1x64xf32>
    %306 = tpu.concatenate %250, %305 in 0 : vector<1x64xf32>, vector<1x64xf32> -> vector<2x64xf32>
    %307 = tpu.concatenate %154, %306 in 1 : vector<2x128xf32>, vector<2x64xf32> -> vector<2x192xf32>
    %c0_96 = arith.constant 0 : index
    %c0_97 = arith.constant 0 : index
    %308 = vector.load %arg18[%c0_96, %c0_97] : memref<1x192xf32, #tpu.memory_space<vmem>>, vector<1x192xf32>
    %309 = vector.extract_strided_slice %308 {offsets = [0, 0], sizes = [1, 64], strides = [1, 1]} : vector<1x192xf32> to vector<1x64xf32>
    %310 = vector.extract_strided_slice %308 {offsets = [0, 64], sizes = [1, 128], strides = [1, 1]} : vector<1x192xf32> to vector<1x128xf32>
    %311 = arith.truncf %307 : vector<2x192xf32> to vector<2x192xbf16>
    %c0_98 = arith.constant 0 : index
    %c0_99 = arith.constant 0 : index
    %312 = vector.load %arg14[%c0_98, %c0_99] : memref<192x64xbf16, #tpu.memory_space<vmem>>, vector<192x64xbf16>
    %cst_100 = arith.constant dense<0.000000e+00> : vector<2x64xf32>
    %313 = tpu.matmul %311, %312, %cst_100 {dimension_numbers = #tpu.dot_dimension_numbers<[1], [0], [0], [1], [0, 0, 1, 1], [], []>} : vector<2x192xbf16>, vector<192x64xbf16>, vector<2x64xf32> -> vector<2x64xf32>
    %314 = vector.broadcast %309 : vector<1x64xf32> to vector<2x64xf32>
    %315 = arith.addf %313, %314 : vector<2x64xf32>
    %316 = arith.truncf %315 : vector<2x64xf32> to vector<2x64xbf16>
    %c0_101 = arith.constant 0 : index
    %c0_102 = arith.constant 0 : index
    %317 = vector.load %arg15[%c0_101, %c0_102] : memref<64x16xbf16, #tpu.memory_space<vmem>>, vector<64x16xbf16>
    %cst_103 = arith.constant dense<0.000000e+00> : vector<2x16xf32>
    %318 = tpu.matmul %316, %317, %cst_103 {dimension_numbers = #tpu.dot_dimension_numbers<[1], [0], [0], [1], [0, 0, 1, 1], [], []>} : vector<2x64xbf16>, vector<64x16xbf16>, vector<2x16xf32> -> vector<2x16xf32>
    %cst_104 = arith.constant 0.000000e+00 : f32
    %319 = vector.broadcast %cst_104 : f32 to vector<2x16xf32>
    %320 = arith.maximumf %318, %319 : vector<2x16xf32>
    %321 = arith.truncf %320 : vector<2x16xf32> to vector<2x16xbf16>
    %c0_105 = arith.constant 0 : index
    %c0_106 = arith.constant 0 : index
    %322 = vector.load %arg16[%c0_105, %c0_106] : memref<16x64xbf16, #tpu.memory_space<vmem>>, vector<16x64xbf16>
    %cst_107 = arith.constant dense<0.000000e+00> : vector<2x64xf32>
    %323 = tpu.matmul %321, %322, %cst_107 {dimension_numbers = #tpu.dot_dimension_numbers<[1], [0], [0], [1], [0, 0, 1, 1], [], []>} : vector<2x16xbf16>, vector<16x64xbf16>, vector<2x64xf32> -> vector<2x64xf32>
    %324 = arith.negf %323 : vector<2x64xf32>
    %325 = math.exp %324 : vector<2x64xf32>
    %cst_108 = arith.constant 1.000000e+00 : f32
    %326 = vector.broadcast %cst_108 : f32 to vector<2x64xf32>
    %327 = arith.addf %326, %325 : vector<2x64xf32>
    %328 = arith.divf %326, %327 : vector<2x64xf32>
    %329 = arith.mulf %315, %328 : vector<2x64xf32>
    %330 = arith.truncf %329 : vector<2x64xf32> to vector<2x64xbf16>
    %c0_109 = arith.constant 0 : index
    %c0_110 = arith.constant 0 : index
    %331 = vector.load %arg17[%c0_109, %c0_110] : memref<64x128xbf16, #tpu.memory_space<vmem>>, vector<64x128xbf16>
    %cst_111 = arith.constant dense<0.000000e+00> : vector<2x128xf32>
    %332 = tpu.matmul %330, %331, %cst_111 {dimension_numbers = #tpu.dot_dimension_numbers<[1], [0], [0], [1], [0, 0, 1, 1], [], []>} : vector<2x64xbf16>, vector<64x128xbf16>, vector<2x128xf32> -> vector<2x128xf32>
    %333 = vector.broadcast %310 : vector<1x128xf32> to vector<2x128xf32>
    %334 = arith.addf %332, %333 : vector<2x128xf32>
    %335 = arith.negf %334 : vector<2x128xf32>
    %336 = math.exp %335 : vector<2x128xf32>
    %cst_112 = arith.constant 1.000000e+00 : f32
    %337 = vector.broadcast %cst_112 : f32 to vector<2x128xf32>
    %338 = arith.addf %337, %336 : vector<2x128xf32>
    %339 = arith.divf %337, %338 : vector<2x128xf32>
    %c0_113 = arith.constant 0 : index
    %c0_114 = arith.constant 0 : index
    %340 = vector.load %arg19[%c0_113, %c0_114] : memref<2x128xf32, #tpu.memory_space<vmem>>, vector<2x128xf32>
    tpu.vector_store %arg19[%c0_113, %c0_114], %334 {strides = array<i32>} : memref<2x128xf32, #tpu.memory_space<vmem>>, vector<2x128xf32>,
    %c0_115 = arith.constant 0 : index
    %c0_116 = arith.constant 0 : index
    %341 = vector.load %arg20[%c0_115, %c0_116] : memref<2x128xf32, #tpu.memory_space<vmem>>, vector<2x128xf32>
    tpu.vector_store %arg20[%c0_115, %c0_116], %339 {strides = array<i32>} : memref<2x128xf32, #tpu.memory_space<vmem>>, vector<2x128xf32>,
    return
  }
  func.func @transform_0(%arg0: i32) -> (i32, i32, i32) {
    %c0_i32 = arith.constant 0 : i32
    %c0_i32_0 = arith.constant 0 : i32
    %c0_i32_1 = arith.constant 0 : i32
    return %arg0, %c0_i32, %c0_i32_0 : i32, i32, i32
  }
  func.func @transform_1(%arg0: i32) -> (i32, i32, i32) {
    %c0_i32 = arith.constant 0 : i32
    %c0_i32_0 = arith.constant 0 : i32
    %c0_i32_1 = arith.constant 0 : i32
    return %arg0, %c0_i32, %c0_i32_0 : i32, i32, i32
  }
  func.func @transform_2(%arg0: i32) -> (i32, i32) {
    %c0_i32 = arith.constant 0 : i32
    %c0_i32_0 = arith.constant 0 : i32
    %c0_i32_1 = arith.constant 0 : i32
    return %c0_i32, %c0_i32_0 : i32, i32
  }
  func.func @transform_3(%arg0: i32) -> (i32, i32) {
    %c0_i32 = arith.constant 0 : i32
    %c0_i32_0 = arith.constant 0 : i32
    %c0_i32_1 = arith.constant 0 : i32
    return %c0_i32, %c0_i32_0 : i32, i32
  }
  func.func @transform_4(%arg0: i32) -> (i32, i32) {
    %c0_i32 = arith.constant 0 : i32
    %c0_i32_0 = arith.constant 0 : i32
    %c0_i32_1 = arith.constant 0 : i32
    return %c0_i32, %c0_i32_0 : i32, i32
  }
  func.func @transform_5(%arg0: i32) -> (i32, i32) {
    %c0_i32 = arith.constant 0 : i32
    %c0_i32_0 = arith.constant 0 : i32
    %c0_i32_1 = arith.constant 0 : i32
    return %c0_i32, %c0_i32_0 : i32, i32
  }
  func.func @transform_6(%arg0: i32) -> (i32, i32) {
    %c0_i32 = arith.constant 0 : i32
    %c0_i32_0 = arith.constant 0 : i32
    %c0_i32_1 = arith.constant 0 : i32
    return %c0_i32, %c0_i32_0 : i32, i32
  }
  func.func @transform_7(%arg0: i32) -> (i32, i32) {
    %c0_i32 = arith.constant 0 : i32
    %c0_i32_0 = arith.constant 0 : i32
    %c0_i32_1 = arith.constant 0 : i32
    return %c0_i32, %c0_i32_0 : i32, i32
  }
  func.func @transform_8(%arg0: i32) -> (i32, i32) {
    %c0_i32 = arith.constant 0 : i32
    %c0_i32_0 = arith.constant 0 : i32
    %c0_i32_1 = arith.constant 0 : i32
    return %c0_i32, %c0_i32_0 : i32, i32
  }
  func.func @transform_9(%arg0: i32) -> (i32, i32) {
    %c0_i32 = arith.constant 0 : i32
    %c0_i32_0 = arith.constant 0 : i32
    %c0_i32_1 = arith.constant 0 : i32
    return %c0_i32, %c0_i32_0 : i32, i32
  }
  func.func @transform_10(%arg0: i32) -> (i32, i32) {
    %c0_i32 = arith.constant 0 : i32
    %c0_i32_0 = arith.constant 0 : i32
    %c0_i32_1 = arith.constant 0 : i32
    return %c0_i32, %c0_i32_0 : i32, i32
  }
  func.func @transform_11(%arg0: i32) -> (i32, i32) {
    %c0_i32 = arith.constant 0 : i32
    %c0_i32_0 = arith.constant 0 : i32
    %c0_i32_1 = arith.constant 0 : i32
    return %c0_i32, %c0_i32_0 : i32, i32
  }
  func.func @transform_12(%arg0: i32) -> (i32, i32) {
    %c0_i32 = arith.constant 0 : i32
    %c0_i32_0 = arith.constant 0 : i32
    %c0_i32_1 = arith.constant 0 : i32
    return %c0_i32, %c0_i32_0 : i32, i32
  }
  func.func @transform_13(%arg0: i32) -> (i32, i32) {
    %c0_i32 = arith.constant 0 : i32
    %c0_i32_0 = arith.constant 0 : i32
    %c0_i32_1 = arith.constant 0 : i32
    return %c0_i32, %c0_i32_0 : i32, i32
  }
  func.func @transform_14(%arg0: i32) -> (i32, i32) {
    %c0_i32 = arith.constant 0 : i32
    %c0_i32_0 = arith.constant 0 : i32
    %c0_i32_1 = arith.constant 0 : i32
    return %c0_i32, %c0_i32_0 : i32, i32
  }
  func.func @transform_15(%arg0: i32) -> (i32, i32) {
    %c0_i32 = arith.constant 0 : i32
    %c0_i32_0 = arith.constant 0 : i32
    %c0_i32_1 = arith.constant 0 : i32
    return %c0_i32, %c0_i32_0 : i32, i32
  }
  func.func @transform_16(%arg0: i32) -> (i32, i32) {
    %c0_i32 = arith.constant 0 : i32
    %c0_i32_0 = arith.constant 0 : i32
    %c0_i32_1 = arith.constant 0 : i32
    return %c0_i32, %c0_i32_0 : i32, i32
  }
  func.func @transform_17(%arg0: i32) -> (i32, i32) {
    %c0_i32 = arith.constant 0 : i32
    %c0_i32_0 = arith.constant 0 : i32
    %c0_i32_1 = arith.constant 0 : i32
    return %c0_i32, %c0_i32_0 : i32, i32
  }
  func.func @transform_18(%arg0: i32) -> (i32, i32) {
    %c0_i32 = arith.constant 0 : i32
    %c0_i32_0 = arith.constant 0 : i32
    return %arg0, %c0_i32 : i32, i32
  }
  func.func @transform_19(%arg0: i32) -> (i32, i32) {
    %c0_i32 = arith.constant 0 : i32
    %c0_i32_0 = arith.constant 0 : i32
    return %arg0, %c0_i32 : i32, i32
  }
}

</mosaic_0001>

<llo_original>
// kernel: tpu_custom_call.1
$region0: #{tpu_custom_call.1}
  #allocation0 [shape = 'u32[]', space=smem, size = 0x4, offset = 0x4, fixed_abs, tag = 'smem constant byte address 0x4 - core index']
  #allocation1 [shape = 'u32[72,128]{1,0:T(1,128)}', space=vmem, size = 0x9000, scoped, tag = 'internal scratch']
  %s0 = inlined_call_operand.vmem [shape: f32[2,8,32], index: 0, kind: input, shape index: {}]
  %s1 = inlined_call_operand.vmem [shape: f32[2,4,16], index: 1, kind: input, shape index: {}]
  %s2 = inlined_call_operand.vmem [shape: bf16[36,32], index: 2, kind: input, shape index: {}]
  %s3 = inlined_call_operand.vmem [shape: bf16[32,64], index: 3, kind: input, shape index: {}]
  %s4 = inlined_call_operand.vmem [shape: bf16[64,36], index: 4, kind: input, shape index: {}]
  %s5 = inlined_call_operand.vmem [shape: f32[1,100], index: 5, kind: input, shape index: {}]
  %s6 = inlined_call_operand.vmem [shape: f32[16,8], index: 6, kind: input, shape index: {}]
  %s7 = inlined_call_operand.vmem [shape: bf16[24,128], index: 7, kind: input, shape index: {}]
  %s8 = inlined_call_operand.vmem [shape: bf16[16,32], index: 8, kind: input, shape index: {}]
  %s9 = inlined_call_operand.vmem [shape: bf16[32,36], index: 9, kind: input, shape index: {}]
  %s10 = inlined_call_operand.vmem [shape: f32[1,68], index: 10, kind: input, shape index: {}]
  %s11 = inlined_call_operand.vmem [shape: f32[8,8], index: 11, kind: input, shape index: {}]
  %s12 = inlined_call_operand.vmem [shape: bf16[16,64], index: 12, kind: input, shape index: {}]
  %s13 = inlined_call_operand.vmem [shape: bf16[192,64], index: 13, kind: input, shape index: {}]
  %s14 = inlined_call_operand.vmem [shape: bf16[64,16], index: 14, kind: input, shape index: {}]
  %s15 = inlined_call_operand.vmem [shape: bf16[16,64], index: 15, kind: input, shape index: {}]
  %s16 = inlined_call_operand.vmem [shape: bf16[64,128], index: 16, kind: input, shape index: {}]
  %s17 = inlined_call_operand.vmem [shape: f32[1,192], index: 17, kind: input, shape index: {}]
  %s18 = inlined_call_operand.hbm [shape: f32[2,128], index: 18, kind: output, shape index: {0}]
  %s19 = inlined_call_operand.hbm [shape: f32[2,128], index: 19, kind: output, shape index: {1}]
  %20 = xla_tuple %s18, %s19
  %s21 = sld [smem:[#allocation0]]
  $region90: #{tpu_custom_call.1} parent=0
    _
  %s23 = ssub.s32 1, %s21
  %s24 = scalar_select 0, %s23, %s21
  $region1: #{tpu_custom_call.1} parent=0
    #allocation2 [shape = 'u8[1024]{0}', space=vmem, size = 0x400, scoped, tag = 'output window, operand 0, single buffered']
    #allocation3 [shape = 's32[1]{0}', space=sflag, size = 0x4, scoped, tag = 'scoped memory for tpu_custom_call.1']
    #allocation4 [shape = 'u8[1024]{0}', space=vmem, size = 0x400, scoped, tag = 'output window, operand 1, single buffered']
    #allocation5 [shape = 's32[1]{0}', space=sflag, size = 0x4, scoped, tag = 'scoped memory for tpu_custom_call.1']
    %25 = vsyncpa [#allocation3], 0
    %26 = vsyncpa [#allocation5], 0
    // Predicated region
    $region2: #{tpu_custom_call.1} parent=1 // pred_check
      _
    $region3: #{tpu_custom_call.1} parent=1 // pred_check_branch
      %28 = sbr.rel (0) target = $region5
    $region4: #{tpu_custom_call.1} parent=1 // pred_region
      _
    $region5: #{tpu_custom_call.1} parent=1 // pred_fallthru
      _
    // Predicated region
    $region6: #{tpu_custom_call.1} parent=1 // pred_check
      _
    $region7: #{tpu_custom_call.1} parent=1 // pred_check_branch
      %30 = sbr.rel (0) target = $region9
    $region8: #{tpu_custom_call.1} parent=1 // pred_region
      _
    $region9: #{tpu_custom_call.1} parent=1 // pred_fallthru
      _
    // Predicated region
    $region10: #{tpu_custom_call.1} parent=1 // pred_check
      _
    $region11: #{tpu_custom_call.1} parent=1 // pred_check_branch
      %32 = sbr.rel (0) target = $region13
    $region12: #{tpu_custom_call.1} parent=1 // pred_region
      _
    $region13: #{tpu_custom_call.1} parent=1 // pred_fallthru
      _
    // Predicated region
    $region14: #{tpu_custom_call.1} parent=1 // pred_check
      _
    $region15: #{tpu_custom_call.1} parent=1 // pred_check_branch
      %34 = sbr.rel (0) target = $region17
    $region16: #{tpu_custom_call.1} parent=1 // pred_region
      _
    $region17: #{tpu_custom_call.1} parent=1 // pred_fallthru
      _
    // Predicated region
    $region18: #{tpu_custom_call.1} parent=1 // pred_check
      _
    $region19: #{tpu_custom_call.1} parent=1 // pred_check_branch
      %36 = sbr.rel (0) target = $region21
    $region20: #{tpu_custom_call.1} parent=1 // pred_region
      _
    $region21: #{tpu_custom_call.1} parent=1 // pred_fallthru
      _
    // Predicated region
    $region22: #{tpu_custom_call.1} parent=1 // pred_check
      _
    $region23: #{tpu_custom_call.1} parent=1 // pred_check_branch
      %38 = sbr.rel (0) target = $region25
    $region24: #{tpu_custom_call.1} parent=1 // pred_region
      _
    $region25: #{tpu_custom_call.1} parent=1 // pred_fallthru
      _
    // Predicated region
    $region26: #{tpu_custom_call.1} parent=1 // pred_check
      _
    $region27: #{tpu_custom_call.1} parent=1 // pred_check_branch
      %40 = sbr.rel (0) target = $region29
    $region28: #{tpu_custom_call.1} parent=1 // pred_region
      _
    $region29: #{tpu_custom_call.1} parent=1 // pred_fallthru
      _
    // Predicated region
    $region30: #{tpu_custom_call.1} parent=1 // pred_check
      _
    $region31: #{tpu_custom_call.1} parent=1 // pred_check_branch
      %42 = sbr.rel (0) target = $region33
    $region32: #{tpu_custom_call.1} parent=1 // pred_region
      _
    $region33: #{tpu_custom_call.1} parent=1 // pred_fallthru
      _
    // Predicated region
    $region34: #{tpu_custom_call.1} parent=1 // pred_check
      _
    $region35: #{tpu_custom_call.1} parent=1 // pred_check_branch
      %44 = sbr.rel (0) target = $region37
    $region36: #{tpu_custom_call.1} parent=1 // pred_region
      _
    $region37: #{tpu_custom_call.1} parent=1 // pred_fallthru
      _
    // Predicated region
    $region38: #{tpu_custom_call.1} parent=1 // pred_check
      _
    $region39: #{tpu_custom_call.1} parent=1 // pred_check_branch
      %46 = sbr.rel (0) target = $region41
    $region40: #{tpu_custom_call.1} parent=1 // pred_region
      _
    $region41: #{tpu_custom_call.1} parent=1 // pred_fallthru
      _
    // Predicated region
    $region42: #{tpu_custom_call.1} parent=1 // pred_check
      _
    $region43: #{tpu_custom_call.1} parent=1 // pred_check_branch
      %48 = sbr.rel (0) target = $region45
    $region44: #{tpu_custom_call.1} parent=1 // pred_region
      _
    $region45: #{tpu_custom_call.1} parent=1 // pred_fallthru
      _
    // Predicated region
    $region46: #{tpu_custom_call.1} parent=1 // pred_check
      _
    $region47: #{tpu_custom_call.1} parent=1 // pred_check_branch
      %50 = sbr.rel (0) target = $region49
    $region48: #{tpu_custom_call.1} parent=1 // pred_region
      _
    $region49: #{tpu_custom_call.1} parent=1 // pred_fallthru
      _
    // Predicated region
    $region50: #{tpu_custom_call.1} parent=1 // pred_check
      _
    $region51: #{tpu_custom_call.1} parent=1 // pred_check_branch
      %52 = sbr.rel (0) target = $region53
    $region52: #{tpu_custom_call.1} parent=1 // pred_region
      _
    $region53: #{tpu_custom_call.1} parent=1 // pred_fallthru
      _
    // Predicated region
    $region54: #{tpu_custom_call.1} parent=1 // pred_check
      _
    $region55: #{tpu_custom_call.1} parent=1 // pred_check_branch
      %54 = sbr.rel (0) target = $region57
    $region56: #{tpu_custom_call.1} parent=1 // pred_region
      _
    $region57: #{tpu_custom_call.1} parent=1 // pred_fallthru
      _
    // Predicated region
    $region58: #{tpu_custom_call.1} parent=1 // pred_check
      _
    $region59: #{tpu_custom_call.1} parent=1 // pred_check_branch
      %56 = sbr.rel (0) target = $region61
    $region60: #{tpu_custom_call.1} parent=1 // pred_region
      _
    $region61: #{tpu_custom_call.1} parent=1 // pred_fallthru
      _
    // Predicated region
    $region62: #{tpu_custom_call.1} parent=1 // pred_check
      _
    $region63: #{tpu_custom_call.1} parent=1 // pred_check_branch
      %58 = sbr.rel (0) target = $region65
    $region64: #{tpu_custom_call.1} parent=1 // pred_region
      _
    $region65: #{tpu_custom_call.1} parent=1 // pred_fallthru
      _
    // Predicated region
    $region66: #{tpu_custom_call.1} parent=1 // pred_check
      _
    $region67: #{tpu_custom_call.1} parent=1 // pred_check_branch
      %60 = sbr.rel (0) target = $region69
    $region68: #{tpu_custom_call.1} parent=1 // pred_region
      _
    $region69: #{tpu_custom_call.1} parent=1 // pred_fallthru
      _
    // Predicated region
    $region70: #{tpu_custom_call.1} parent=1 // pred_check
      _
    $region71: #{tpu_custom_call.1} parent=1 // pred_check_branch
      %62 = sbr.rel (0) target = $region73
    $region72: #{tpu_custom_call.1} parent=1 // pred_region
      _
    $region73: #{tpu_custom_call.1} parent=1 // pred_fallthru
      _
    %v64 = vld [vmem:[%s2] sm:$0xf]
    %v65 = vld [vmem:[%s2 + $0x4] sm:$0xf]
    %v66 = vld [vmem:[%s2 + $0x8] sm:$0xf]
    %v67 = vld [vmem:[%s2 + $0xc] sm:$0xf]
    %v68 = vld [vmem:[%s2 + $0x10] sm:$0x3]
    %v69 = vld [vmem:[%s0] sm:$0xff]
    %v70 = vld [vmem:[%s0 + $0x8] sm:$0xff]
    %v71 = vld [vmem:[%s3] sm:$0xf]
    %v72 = vld [vmem:[%s3 + $0x4] sm:$0xf]
    %v73 = vld [vmem:[%s3 + $0x8] sm:$0xf]
    %v74 = vld [vmem:[%s3 + $0xc] sm:$0xf]
    %v75 = vld [vmem:[%s4] sm:$0xf]
    %v76 = vld [vmem:[%s4 + $0x4] sm:$0xf]
    %v77 = vld [vmem:[%s4 + $0x8] sm:$0xf]
    %v78 = vld [vmem:[%s4 + $0xc] sm:$0xf]
    %v79 = vld [vmem:[%s4 + $0x10] sm:$0xf]
    %v80 = vld [vmem:[%s4 + $0x14] sm:$0xf]
    %v81 = vld [vmem:[%s4 + $0x18] sm:$0xf]
    %v82 = vld [vmem:[%s4 + $0x1c] sm:$0xf]
    %v83 = vld [vmem:[%s5] sm:$0x1]
    %v84 = vld [vmem:[%s6] sm:$0xff]
    %v85 = vld [vmem:[%s6 + $0x8] sm:$0xff]
    %v86 = vld [vmem:[%s7] sm:$0xf]
    %v87 = vld [vmem:[%s7 + $0x4] sm:$0xf]
    %v88 = vld [vmem:[%s7 + $0x8] sm:$0xf]
    %v89 = vpack.c.bf16 %v70, %v69
    %v91 = vperm.slane %v83, 0
    %v97 = vunpack.c.l.b16 %v71
    %v98 = vunpack.c.l.b16 %v72
    %v99 = vunpack.c.l.b16 %v73
    %v100 = vunpack.c.l.b16 %v74
    %v101 = vpack.c.b16 %v98, %v97
    %v102 = vpack.c.b16 %v100, %v99
    %vm105 = vcmask 261120
    %v107 = vsel %vm105, %v89, 0
    %109 = vmatpush.bf16.msra.mxu0 0
    %110 = vmatpush.bf16.msra.mxu0 0
    %111 = vmatpush.bf16.msra.mxu0 0
    %112 = vmatpush.bf16.msra.mxu0 0
    %113 = vmatpush.bf16.msra.mxu0 0
    %114 = vmatpush.bf16.msra.mxu0 0
    %115 = vmatpush.bf16.msra.mxu0 %v102
    %116 = vmatpush.bf16.msra.mxu0 %v101
    %117 = vmatmul.bf16.gmra.mxu0 %v107
    %v118 = vpop.f32.mrf.mxu0
    %v119 = vadd.f32 %v91, %v118
    %v120 = vpop.f32.mrf.mxu0
    %v121 = vadd.f32 %v91, %v120
    %122 = vdwg.mxu0
    %v123 = vpack.c.bf16 %v121, %v119
    %v132 = vunpack.c.l.b16 %v75
    %v133 = vunpack.c.l.b16 %v76
    %v134 = vunpack.c.l.b16 %v77
    %v135 = vunpack.c.l.b16 %v78
    %v136 = vunpack.c.l.b16 %v79
    %v137 = vunpack.c.l.b16 %v80
    %v138 = vunpack.c.l.b16 %v81
    %v139 = vunpack.c.l.b16 %v82
    %v140 = vpack.c.b16 %v133, %v132
    %v141 = vpack.c.b16 %v135, %v134
    %v142 = vpack.c.b16 %v137, %v136
    %v143 = vpack.c.b16 %v139, %v138
    %148 = vrot.lane.b32.xlu0 %v91, 64
    %v149 = vpop.permute.xlu0 %148
    %vm151 = vcmask 523264
    %v153 = vsel %vm151, %v123, 0
    %155 = vmatpush.bf16.msra.mxu0 0
    %156 = vmatpush.bf16.msra.mxu0 0
    %157 = vmatpush.bf16.msra.mxu0 0
    %158 = vmatpush.bf16.msra.mxu0 0
    %159 = vmatpush.bf16.msra.mxu0 %v143
    %160 = vmatpush.bf16.msra.mxu0 %v142
    %161 = vmatpush.bf16.msra.mxu0 %v141
    %162 = vmatpush.bf16.msra.mxu0 %v140
    %163 = vmatmul.bf16.gmra.mxu0 %v153
    %v164 = vpop.f32.mrf.mxu0
    %v165 = vadd.f32 %v149, %v164
    %v166 = vpop.f32.mrf.mxu0
    %v167 = vadd.f32 %v149, %v166
    %168 = vdwg.mxu0
    %v169 = vxor.u32 %v165, 2147483648
    %v170 = vxor.u32 %v167, 2147483648
    %v171 = vmul.f32 %v169, 1.442695
    %v172 = vpow.pop %v171
    %v173 = vmul.f32 %v170, 1.442695
    %v174 = vpow.pop %v173
    %v175 = vadd.f32 %v172, 1.0
    %v176 = vadd.f32 %v174, 1.0
    %v177 = vrcp.pop %v175
    %v178 = vmul.f32 %v175, %v177
    %v179 = vsub.f32 1.0, %v178
    %v180 = vmul.f32 %v177, %v179
    %v181 = vadd.f32 %v177, %v180
    %vm182 = vweird.f32 %v175
    %vm183 = vweird.f32 %v177
    %vm184 = vmor %vm182, %vm183
    %v185 = vsel %vm184, %v177, %v181
    %v186 = vand.u32 2147483647, %v175
    %vm187 = vcmp.eq.f32.partialorder %v186, 8.507059e+37
    %v188 = vand.u32 %v175, 2147483648
    %v189 = vor.u32 1.1754944e-38, %v188
    %v190 = vsel %vm187, %v189, %v185
    %v191 = vmul.f32 1.0, %v190
    %v192 = vrcp.pop %v176
    %v193 = vmul.f32 %v176, %v192
    %v194 = vsub.f32 1.0, %v193
    %v195 = vmul.f32 %v192, %v194
    %v196 = vadd.f32 %v192, %v195
    %vm197 = vweird.f32 %v176
    %vm198 = vweird.f32 %v192
    %vm199 = vmor %vm197, %vm198
    %v200 = vsel %vm199, %v192, %v196
    %v201 = vand.u32 2147483647, %v176
    %vm202 = vcmp.eq.f32.partialorder %v201, 8.507059e+37
    %v203 = vand.u32 %v176, 2147483648
    %v204 = vor.u32 1.1754944e-38, %v203
    %v205 = vsel %vm202, %v204, %v200
    %v206 = vmul.f32 1.0, %v205
    %vm207 = vcmask 293920
    %v208 = vsel %vm207, %v165, -inf
    %209 = vmax.xlane.f32.xlu0 %v208
    %v210 = vpop.xlane.xlu0 %209
    %v211 = vsel %vm207, %v167, -inf
    %212 = vmax.xlane.f32.xlu0 %v211
    %v213 = vpop.xlane.xlu0 %212
    %v214 = vsub.f32 %v165, %v210
    %v215 = vsub.f32 %v167, %v213
    %v216 = vmul.f32 %v214, 1.442695
    %v217 = vpow.pop %v216
    %v218 = vmul.f32 %v215, 1.442695
    %v219 = vpow.pop %v218
    %v220 = vpack.c.bf16 %v219, %v217
    %222 = vrot.lane.b32.xlu0 %v220, 124
    %v223 = vpop.permute.xlu0 %222
    %v228 = vunpack.c.l.b16 %v64
    %v229 = vunpack.c.l.b16 %v65
    %v230 = vunpack.c.l.b16 %v66
    %v231 = vunpack.c.l.b16 %v67
    %v232 = vpack.c.b16 %v229, %v228
    %v233 = vpack.c.b16 %v231, %v230
    %v237 = vsel %vm105, %v223, 0
    %239 = vmatpush.bf16.msra.mxu0 0
    %240 = vmatpush.bf16.msra.mxu0 0
    %241 = vmatpush.bf16.msra.mxu0 0
    %242 = vmatpush.bf16.msra.mxu0 0
    %243 = vmatpush.bf16.msra.mxu0 0
    %244 = vmatpush.bf16.msra.mxu0 0
    %245 = vmatpush.bf16.msra.mxu0 %v233
    %246 = vmatpush.bf16.msra.mxu0 %v232
    %247 = vmatmul.bf16.gmra.mxu0 %v237
    %v248 = vpop.f32.mrf.mxu0
    %v249 = vadd.f32 0.0, %v248
    %v250 = vpop.f32.mrf.mxu0
    %v251 = vadd.f32 0.0, %v250
    %252 = vdwg.mxu0
    %v253 = vmax.f32 %v249, 1e-30
    %v254 = vmax.f32 %v251, 1e-30
    %v255 = vrcp.pop %v253
    %v256 = vrcp.pop %v254
    %v257 = vmul.f32 %v191, %v255
    %v258 = vmul.f32 %v206, %v256
    %v259 = vpack.c.bf16 %v258, %v257
    %vm260 = vcmask 31744
    %v262 = vsel %vm260, %v259, 0
    %vm264 = vcmask 1041408
    %v266 = vsel %vm264, %v68, 0
    %268 = vmatpush.bf16.msra.mxu0 0
    %269 = vmatpush.bf16.msra.mxu0 0
    %270 = vmatpush.bf16.msra.mxu0 0
    %271 = vmatpush.bf16.msra.mxu0 0
    %272 = vmatpush.bf16.msra.mxu0 0
    %273 = vmatpush.bf16.msra.mxu0 0
    %274 = vmatpush.bf16.msra.mxu0 0
    %275 = vmatpush.bf16.msra.mxu0 %v266
    %276 = vmatmul.bf16.gmra.mxu0 %v262
    %v277 = vpop.f32.mrf.mxu0
    %v278 = vadd.f32 0.0, %v277
    %v279 = vpop.f32.mrf.mxu0
    %v280 = vadd.f32 0.0, %v279
    %281 = vdwg.mxu0
    %284 = vrot.lane.b32.xlu0 %v278, 4
    %v285 = vpop.permute.xlu0 %284
    %286 = vrot.lane.b32.xlu0 %v280, 4
    %v287 = vpop.permute.xlu0 %286
    %v290 = vmul.f32 %v217, %v285
    %v291 = vmul.f32 %v219, %v287
    %292 = vxpose.xlu0.b32.start [1/16] %v119, 128
    %293 = vxpose.xlu0.b32.cont [2/16] %v121, 128
    %294 = vxpose.xlu0.b32.cont [3/16] 0.0, 128
    %295 = vxpose.xlu0.b32.cont [4/16] 0.0, 128
    %296 = vxpose.xlu0.b32.cont [5/16] 0.0, 128
    %297 = vxpose.xlu0.b32.cont [6/16] 0.0, 128
    %298 = vxpose.xlu0.b32.cont [7/16] 0.0, 128
    %299 = vxpose.xlu0.b32.cont [8/16] 0.0, 128
    %300 = vxpose.xlu0.b32.cont [9/16] 0.0, 128
    %301 = vxpose.xlu0.b32.cont [10/16] 0.0, 128
    %302 = vxpose.xlu0.b32.cont [11/16] 0.0, 128
    %303 = vxpose.xlu0.b32.cont [12/16] 0.0, 128
    %304 = vxpose.xlu0.b32.cont [13/16] 0.0, 128
    %305 = vxpose.xlu0.b32.cont [14/16] 0.0, 128
    %306 = vxpose.xlu0.b32.cont [15/16] 0.0, 128
    %307 = vxpose.xlu0.b32.end [16/16] 0.0, 128
    %v308 = vpop.trf.xlu0
    %v309 = vpop.trf.xlu0
    %v310 = vpop.trf.xlu0
    %v311 = vpop.trf.xlu0
    %v312 = vpop.trf.xlu0
    %v313 = vpop.trf.xlu0
    %v314 = vpop.trf.xlu0
    %v315 = vpop.trf.xlu0
    %v316 = vpop.trf.xlu0
    %v317 = vpop.trf.xlu0
    %v318 = vpop.trf.xlu0
    %v319 = vpop.trf.xlu0
    %v320 = vpop.trf.xlu0
    %v321 = vpop.trf.xlu0
    %v322 = vpop.trf.xlu0
    %v323 = vpop.trf.xlu0
    %v324 = vpack.c.bf16 %v309, %v308
    %v325 = vpack.c.bf16 %v290, %v290
    %vm326 = vcmask 97312
    %v327 = vsel %vm326, %v290, 0.0
    %v328 = vrot.slane %v327, 4
    %v329 = vadd.f32 %v327, %v328
    %v330 = vrot.slane %v329, 2
    %v331 = vadd.f32 %v329, %v330
    %v332 = vrot.slane %v331, 1
    %v333 = vadd.f32 %v331, %v332
    %v334 = vadd.f32 %v333, 0.0
    %v335 = vpack.c.bf16 %v311, %v310
    %337 = vrot.lane.b32.xlu0 %v325, 116
    %v338 = vpop.permute.xlu0 %337
    %vm339 = vcmask 64512
    %v341 = vsel %vm339, %v335, 0
    %vm343 = vcmask 1043456
    %v345 = vsel %vm343, %v338, 0
    %347 = vmatpush.bf16.msra.mxu0 0
    %348 = vmatpush.bf16.msra.mxu0 0
    %349 = vmatpush.bf16.msra.mxu0 0
    %350 = vmatpush.bf16.msra.mxu0 0
    %351 = vmatpush.bf16.msra.mxu0 0
    %352 = vmatpush.bf16.msra.mxu0 0
    %353 = vmatpush.bf16.msra.mxu0 0
    %354 = vmatpush.bf16.msra.mxu0 %v345
    %355 = vmatmul.bf16.gmra.mxu0 %v341
    %v356 = vpop.f32.mrf.mxu0
    %v357 = vadd.f32 0.0, %v356
    %v358 = vpop.f32.mrf.mxu0
    %v359 = vadd.f32 0.0, %v358
    %360 = vdwg.mxu0
    %361 = vrot.lane.b32.xlu0 %v325, 124
    %v362 = vpop.permute.xlu0 %361
    %v364 = vsel %vm339, %v324, 0
    %v367 = vsel %vm343, %v362, 0
    %369 = vmatpush.bf16.msra.mxu0 0
    %370 = vmatpush.bf16.msra.mxu0 0
    %371 = vmatpush.bf16.msra.mxu0 0
    %372 = vmatpush.bf16.msra.mxu0 0
    %373 = vmatpush.bf16.msra.mxu0 0
    %374 = vmatpush.bf16.msra.mxu0 0
    %375 = vmatpush.bf16.msra.mxu0 0
    %376 = vmatpush.bf16.msra.mxu0 %v367
    %377 = vmatmul.bf16.gmra.mxu0 %v364
    %v378 = vpop.f32.mrf.mxu0
    %v379 = vadd.f32 %v357, %v378
    %v380 = vpop.f32.mrf.mxu0
    %v381 = vadd.f32 %v359, %v380
    %382 = vdwg.mxu0
    %vm383 = vcmask 162912
    %v384 = vsel %vm383, %v290, 0.0
    %v385 = vrot.slane %v384, 4
    %v386 = vadd.f32 %v384, %v385
    %v387 = vrot.slane %v386, 2
    %v388 = vadd.f32 %v386, %v387
    %v389 = vrot.slane %v388, 1
    %v390 = vadd.f32 %v388, %v389
    %392 = vrot.lane.b32.xlu0 %v390, 120
    %v393 = vpop.permute.xlu0 %392
    %v395 = vadd.f32 %v334, %v393
    %v396 = vpack.c.bf16 %v313, %v312
    %397 = vrot.lane.b32.xlu0 %v325, 108
    %v398 = vpop.permute.xlu0 %397
    %v400 = vsel %vm339, %v396, 0
    %v403 = vsel %vm343, %v398, 0
    %405 = vmatpush.bf16.msra.mxu0 0
    %406 = vmatpush.bf16.msra.mxu0 0
    %407 = vmatpush.bf16.msra.mxu0 0
    %408 = vmatpush.bf16.msra.mxu0 0
    %409 = vmatpush.bf16.msra.mxu0 0
    %410 = vmatpush.bf16.msra.mxu0 0
    %411 = vmatpush.bf16.msra.mxu0 0
    %412 = vmatpush.bf16.msra.mxu0 %v403
    %413 = vmatmul.bf16.gmra.mxu0 %v400
    %v414 = vpop.f32.mrf.mxu0
    %v415 = vadd.f32 0.0, %v414
    %v416 = vpop.f32.mrf.mxu0
    %v417 = vadd.f32 0.0, %v416
    %418 = vdwg.mxu0
    %v419 = vadd.f32 %v379, %v415
    %v420 = vadd.f32 %v381, %v417
    %vm421 = vcmask 228512
    %v422 = vsel %vm421, %v290, 0.0
    %v423 = vrot.slane %v422, 4
    %v424 = vadd.f32 %v422, %v423
    %v425 = vrot.slane %v424, 2
    %v426 = vadd.f32 %v424, %v425
    %v427 = vrot.slane %v426, 1
    %v428 = vadd.f32 %v426, %v427
    %430 = vrot.lane.b32.xlu0 %v428, 112
    %v431 = vpop.permute.xlu0 %430
    %v433 = vadd.f32 %v395, %v431
    %v434 = vpack.c.bf16 %v315, %v314
    %435 = vrot.lane.b32.xlu0 %v325, 100
    %v436 = vpop.permute.xlu0 %435
    %v438 = vsel %vm339, %v434, 0
    %v441 = vsel %vm343, %v436, 0
    %443 = vmatpush.bf16.msra.mxu0 0
    %444 = vmatpush.bf16.msra.mxu0 0
    %445 = vmatpush.bf16.msra.mxu0 0
    %446 = vmatpush.bf16.msra.mxu0 0
    %447 = vmatpush.bf16.msra.mxu0 0
    %448 = vmatpush.bf16.msra.mxu0 0
    %449 = vmatpush.bf16.msra.mxu0 0
    %450 = vmatpush.bf16.msra.mxu0 %v441
    %451 = vmatmul.bf16.gmra.mxu0 %v438
    %v452 = vpop.f32.mrf.mxu0
    %v453 = vadd.f32 0.0, %v452
    %v454 = vpop.f32.mrf.mxu0
    %v455 = vadd.f32 0.0, %v454
    %456 = vdwg.mxu0
    %v457 = vadd.f32 %v419, %v453
    %v458 = vadd.f32 %v420, %v455
    %vm459 = vcmask 294112
    %v460 = vsel %vm459, %v290, 0.0
    %v461 = vrot.slane %v460, 4
    %v462 = vadd.f32 %v460, %v461
    %v463 = vrot.slane %v462, 2
    %v464 = vadd.f32 %v462, %v463
    %v465 = vrot.slane %v464, 1
    %v466 = vadd.f32 %v464, %v465
    %468 = vrot.lane.b32.xlu0 %v466, 104
    %v469 = vpop.permute.xlu0 %468
    %v471 = vadd.f32 %v433, %v469
    %v472 = vperm.slane %v471, 0
    %475 = vrot.lane.b32.xlu0 %v84, 4
    %v476 = vpop.permute.xlu0 %475
    %477 = vrot.lane.b32.xlu0 %v85, 4
    %v478 = vpop.permute.xlu0 %477
    %v481 = vmul.f32 %v472, %v476
    %v482 = vmul.f32 %v472, %v478
    %485 = vrot.lane.b32.xlu0 %v481, 124
    %v486 = vpop.permute.xlu0 %485
    %487 = vrot.lane.b32.xlu0 %v482, 124
    %v488 = vpop.permute.xlu0 %487
    %v491 = vsub.f32 %v457, %v486
    %v492 = vsub.f32 %v458, %v488
    %v493 = vmul.f32 %v491, %v491
    %v494 = vmul.f32 %v492, %v492
    %v495 = vsel %vm339, %v493, 0.0
    %v496 = vsel %vm339, %v494, 0.0
    %v497 = vadd.f32 %v495, %v496
    %v498 = vrot.slane %v497, 4
    %v499 = vadd.f32 %v497, %v498
    %v500 = vrot.slane %v499, 2
    %v501 = vadd.f32 %v499, %v500
    %v502 = vrot.slane %v501, 1
    %v503 = vadd.f32 %v501, %v502
    %v504 = vmax.f32 %v503, 1e-24
    %v505 = vrsqrt.pop %v504
    %v506 = vmul.f32 %v505, %v504
    %v507 = vmul.f32 %v506, %v505
    %v508 = vmul.f32 0.5, %v507
    %v509 = vsub.f32 1.5, %v508
    %v510 = vmul.f32 %v505, %v509
    %vm511 = vweird.f32 %v504
    %vm512 = vweird.f32 %v505
    %vm513 = vmor %vm511, %vm512
    %v514 = vsel %vm513, %v505, %v510
    %v515 = vmul.f32 %v491, %v514
    %v516 = vmul.f32 %v492, %v514
    %v517 = vpack.c.bf16 %v516, %v515
    %v519 = vsel %vm339, %v517, 0
    %v522 = vsel %vm343, %v86, 0
    %524 = vmatpush.bf16.msra.mxu0 0
    %525 = vmatpush.bf16.msra.mxu0 0
    %526 = vmatpush.bf16.msra.mxu0 0
    %527 = vmatpush.bf16.msra.mxu0 0
    %528 = vmatpush.bf16.msra.mxu0 0
    %529 = vmatpush.bf16.msra.mxu0 0
    %530 = vmatpush.bf16.msra.mxu0 0
    %531 = vmatpush.bf16.msra.mxu0 %v522
    %532 = vmatmul.bf16.gmra.mxu0 %v519
    %v533 = vpop.f32.mrf.mxu0
    %v534 = vadd.f32 0.0, %v533
    %v535 = vpop.f32.mrf.mxu0
    %v536 = vadd.f32 0.0, %v535
    %537 = vdwg.mxu0
    %v538 = vunpack.c.l.bf16 %v87
    %v539 = vunpack.c.l.bf16 %v88
    %v540 = vmul.f32 %v534, %v538
    %v541 = vmul.f32 %v536, %v539
    %v542 = vadd.f32 %v540, %v541
    %v543 = vrot.slane %v542, 4
    %v544 = vadd.f32 %v542, %v543
    %v545 = vrot.slane %v544, 2
    %v546 = vadd.f32 %v544, %v545
    %v547 = vrot.slane %v546, 1
    %v548 = vadd.f32 %v546, %v547
    %v549 = vpack.c.bf16 %v291, %v291
    %v550 = vsel %vm326, %v291, 0.0
    %v551 = vrot.slane %v550, 4
    %v552 = vadd.f32 %v550, %v551
    %v553 = vrot.slane %v552, 2
    %v554 = vadd.f32 %v552, %v553
    %v555 = vrot.slane %v554, 1
    %v556 = vadd.f32 %v554, %v555
    %v557 = vadd.f32 %v556, 0.0
    %559 = vrot.lane.b32.xlu0 %v335, 120
    %v560 = vpop.permute.xlu0 %559
    %562 = vrot.lane.b32.xlu0 %v549, 116
    %v563 = vpop.permute.xlu0 %562
    %v565 = vsel %vm339, %v560, 0
    %v568 = vsel %vm343, %v563, 0
    %570 = vmatpush.bf16.msra.mxu0 0
    %571 = vmatpush.bf16.msra.mxu0 0
    %572 = vmatpush.bf16.msra.mxu0 0
    %573 = vmatpush.bf16.msra.mxu0 0
    %574 = vmatpush.bf16.msra.mxu0 0
    %575 = vmatpush.bf16.msra.mxu0 0
    %576 = vmatpush.bf16.msra.mxu0 0
    %577 = vmatpush.bf16.msra.mxu0 %v568
    %578 = vmatmul.bf16.gmra.mxu0 %v565
    %v579 = vpop.f32.mrf.mxu0
    %v580 = vadd.f32 0.0, %v579
    %v581 = vpop.f32.mrf.mxu0
    %v582 = vadd.f32 0.0, %v581
    %583 = vdwg.mxu0
    %585 = vrot.lane.b32.xlu0 %v324, 120
    %v586 = vpop.permute.xlu0 %585
    %587 = vrot.lane.b32.xlu0 %v549, 124
    %v588 = vpop.permute.xlu0 %587
    %v590 = vsel %vm339, %v586, 0
    %v593 = vsel %vm343, %v588, 0
    %595 = vmatpush.bf16.msra.mxu0 0
    %596 = vmatpush.bf16.msra.mxu0 0
    %597 = vmatpush.bf16.msra.mxu0 0
    %598 = vmatpush.bf16.msra.mxu0 0
    %599 = vmatpush.bf16.msra.mxu0 0
    %600 = vmatpush.bf16.msra.mxu0 0
    %601 = vmatpush.bf16.msra.mxu0 0
    %602 = vmatpush.bf16.msra.mxu0 %v593
    %603 = vmatmul.bf16.gmra.mxu0 %v590
    %v604 = vpop.f32.mrf.mxu0
    %v605 = vadd.f32 %v580, %v604
    %v606 = vpop.f32.mrf.mxu0
    %v607 = vadd.f32 %v582, %v606
    %608 = vdwg.mxu0
    %v609 = vsel %vm383, %v291, 0.0
    %v610 = vrot.slane %v609, 4
    %v611 = vadd.f32 %v609, %v610
    %v612 = vrot.slane %v611, 2
    %v613 = vadd.f32 %v611, %v612
    %v614 = vrot.slane %v613, 1
    %v615 = vadd.f32 %v613, %v614
    %617 = vrot.lane.b32.xlu0 %v615, 120
    %v618 = vpop.permute.xlu0 %617
    %v620 = vadd.f32 %v557, %v618
    %622 = vrot.lane.b32.xlu0 %v396, 120
    %v623 = vpop.permute.xlu0 %622
    %624 = vrot.lane.b32.xlu0 %v549, 108
    %v625 = vpop.permute.xlu0 %624
    %v627 = vsel %vm339, %v623, 0
    %v630 = vsel %vm343, %v625, 0
    %632 = vmatpush.bf16.msra.mxu0 0
    %633 = vmatpush.bf16.msra.mxu0 0
    %634 = vmatpush.bf16.msra.mxu0 0
    %635 = vmatpush.bf16.msra.mxu0 0
    %636 = vmatpush.bf16.msra.mxu0 0
    %637 = vmatpush.bf16.msra.mxu0 0
    %638 = vmatpush.bf16.msra.mxu0 0
    %639 = vmatpush.bf16.msra.mxu0 %v630
    %640 = vmatmul.bf16.gmra.mxu0 %v627
    %v641 = vpop.f32.mrf.mxu0
    %v642 = vadd.f32 0.0, %v641
    %v643 = vpop.f32.mrf.mxu0
    %v644 = vadd.f32 0.0, %v643
    %645 = vdwg.mxu0
    %v646 = vadd.f32 %v605, %v642
    %v647 = vadd.f32 %v607, %v644
    %v648 = vsel %vm421, %v291, 0.0
    %v649 = vrot.slane %v648, 4
    %v650 = vadd.f32 %v648, %v649
    %v651 = vrot.slane %v650, 2
    %v652 = vadd.f32 %v650, %v651
    %v653 = vrot.slane %v652, 1
    %v654 = vadd.f32 %v652, %v653
    %656 = vrot.lane.b32.xlu0 %v654, 112
    %v657 = vpop.permute.xlu0 %656
    %v659 = vadd.f32 %v620, %v657
    %661 = vrot.lane.b32.xlu0 %v434, 120
    %v662 = vpop.permute.xlu0 %661
    %663 = vrot.lane.b32.xlu0 %v549, 100
    %v664 = vpop.permute.xlu0 %663
    %v666 = vsel %vm339, %v662, 0
    %v669 = vsel %vm343, %v664, 0
    %671 = vmatpush.bf16.msra.mxu0 0
    %672 = vmatpush.bf16.msra.mxu0 0
    %673 = vmatpush.bf16.msra.mxu0 0
    %674 = vmatpush.bf16.msra.mxu0 0
    %675 = vmatpush.bf16.msra.mxu0 0
    %676 = vmatpush.bf16.msra.mxu0 0
    %677 = vmatpush.bf16.msra.mxu0 0
    %678 = vmatpush.bf16.msra.mxu0 %v669
    %679 = vmatmul.bf16.gmra.mxu0 %v666
    %v680 = vpop.f32.mrf.mxu0
    %v681 = vadd.f32 0.0, %v680
    %v682 = vpop.f32.mrf.mxu0
    %v683 = vadd.f32 0.0, %v682
    %684 = vdwg.mxu0
    %v685 = vadd.f32 %v646, %v681
    %v686 = vadd.f32 %v647, %v683
    %v687 = vsel %vm459, %v291, 0.0
    %v688 = vrot.slane %v687, 4
    %v689 = vadd.f32 %v687, %v688
    %v690 = vrot.slane %v689, 2
    %v691 = vadd.f32 %v689, %v690
    %v692 = vrot.slane %v691, 1
    %v693 = vadd.f32 %v691, %v692
    %695 = vrot.lane.b32.xlu0 %v693, 104
    %v696 = vpop.permute.xlu0 %695
    %v698 = vadd.f32 %v659, %v696
    %v699 = vperm.slane %v698, 0
    %v700 = vmul.f32 %v699, %v476
    %v701 = vmul.f32 %v699, %v478
    %704 = vrot.lane.b32.xlu0 %v700, 124
    %v705 = vpop.permute.xlu0 %704
    %706 = vrot.lane.b32.xlu0 %v701, 124
    %v707 = vpop.permute.xlu0 %706
    %v710 = vsub.f32 %v685, %v705
    %v711 = vsub.f32 %v686, %v707
    %v712 = vmul.f32 %v710, %v710
    %v713 = vmul.f32 %v711, %v711
    %v714 = vsel %vm339, %v712, 0.0
    %v715 = vsel %vm339, %v713, 0.0
    %v716 = vadd.f32 %v714, %v715
    %v717 = vrot.slane %v716, 4
    %v718 = vadd.f32 %v716, %v717
    %v719 = vrot.slane %v718, 2
    %v720 = vadd.f32 %v718, %v719
    %v721 = vrot.slane %v720, 1
    %v722 = vadd.f32 %v720, %v721
    %v723 = vmax.f32 %v722, 1e-24
    %v724 = vrsqrt.pop %v723
    %v725 = vmul.f32 %v724, %v723
    %v726 = vmul.f32 %v725, %v724
    %v727 = vmul.f32 0.5, %v726
    %v728 = vsub.f32 1.5, %v727
    %v729 = vmul.f32 %v724, %v728
    %vm730 = vweird.f32 %v723
    %vm731 = vweird.f32 %v724
    %vm732 = vmor %vm730, %vm731
    %v733 = vsel %vm732, %v724, %v729
    %v734 = vmul.f32 %v710, %v733
    %v735 = vmul.f32 %v711, %v733
    %v736 = vpack.c.bf16 %v735, %v734
    %v738 = vsel %vm339, %v736, 0
    %740 = vmatpush.bf16.msra.mxu0 0
    %741 = vmatpush.bf16.msra.mxu0 0
    %742 = vmatpush.bf16.msra.mxu0 0
    %743 = vmatpush.bf16.msra.mxu0 0
    %744 = vmatpush.bf16.msra.mxu0 0
    %745 = vmatpush.bf16.msra.mxu0 0
    %746 = vmatpush.bf16.msra.mxu0 0
    %747 = vmatpush.bf16.msra.mxu0 %v522
    %748 = vmatmul.bf16.gmra.mxu0 %v738
    %v749 = vpop.f32.mrf.mxu0
    %v750 = vadd.f32 0.0, %v749
    %v751 = vpop.f32.mrf.mxu0
    %v752 = vadd.f32 0.0, %v751
    %753 = vdwg.mxu0
    %v754 = vmul.f32 %v750, %v538
    %v755 = vmul.f32 %v752, %v539
    %v756 = vadd.f32 %v754, %v755
    %v757 = vrot.slane %v756, 4
    %v758 = vadd.f32 %v756, %v757
    %v759 = vrot.slane %v758, 2
    %v760 = vadd.f32 %v758, %v759
    %v761 = vrot.slane %v760, 1
    %v762 = vadd.f32 %v760, %v761
    %vm763 = vcmask 1040384
    %v764 = vsel %vm763, %v548, %v762
    %v765 = vld [vmem:[%s1] sm:$0xf]
    %v766 = vld [vmem:[%s1 + $0x4] sm:$0xf]
    %v767 = vld [vmem:[%s8] sm:$0xf]
    %v768 = vld [vmem:[%s8 + $0x4] sm:$0xf]
    %v769 = vld [vmem:[%s9] sm:$0xf]
    %v770 = vld [vmem:[%s9 + $0x4] sm:$0xf]
    %v771 = vld [vmem:[%s9 + $0x8] sm:$0xf]
    %v772 = vld [vmem:[%s9 + $0xc] sm:$0xf]
    %v773 = vld [vmem:[%s10] sm:$0x1]
    %v774 = vld [vmem:[%s11] sm:$0xff]
    %v775 = vld [vmem:[%s12] sm:$0xf]
    %v776 = vld [vmem:[%s12 + $0x4] sm:$0xf]
    %779 = vst [vmem:[#allocation1] ss:$2 sm:$0xff] %v765
    %s780 = scalar_lea.vmem [#allocation1], 1
    %781 = vst [vmem:[%s780] ss:$2 sm:$0xff] %v766
    %v782 = vld.sshfl [vmem:[#allocation1] sm:$0xff pattern:$0x75316420]
    %v784 = vpack.c.bf16 %v782, %v782
    %v786 = vperm.slane %v773, 0
    %v790 = vunpack.c.l.b16 %v767
    %v791 = vunpack.c.l.b16 %v768
    %v792 = vpack.c.b16 %v791, %v790
    %vm794 = vcmask 130048
    %v796 = vsel %vm794, %v784, 0
    %798 = vmatpush.bf16.msra.mxu0 0
    %799 = vmatpush.bf16.msra.mxu0 0
    %800 = vmatpush.bf16.msra.mxu0 0
    %801 = vmatpush.bf16.msra.mxu0 0
    %802 = vmatpush.bf16.msra.mxu0 0
    %803 = vmatpush.bf16.msra.mxu0 0
    %804 = vmatpush.bf16.msra.mxu0 0
    %805 = vmatpush.bf16.msra.mxu0 %v792
    %806 = vmatmul.bf16.gmra.mxu0 %v796
    %v807 = vpop.f32.mrf.mxu0
    %v808 = vadd.f32 %v786, %v807
    %v809 = vpop.f32.mrf.mxu0
    %810 = vdwg.mxu0
    %v811 = vpack.c.bf16 %v808, %v808
    %v816 = vunpack.c.l.b16 %v769
    %v817 = vunpack.c.l.b16 %v770
    %v818 = vunpack.c.l.b16 %v771
    %v819 = vunpack.c.l.b16 %v772
    %v820 = vpack.c.b16 %v817, %v816
    %v821 = vpack.c.b16 %v819, %v818
    %824 = vrot.lane.b32.xlu0 %v786, 96
    %v825 = vpop.permute.xlu0 %824
    %v828 = vsel %vm105, %v811, 0
    %830 = vmatpush.bf16.msra.mxu0 0
    %831 = vmatpush.bf16.msra.mxu0 0
    %832 = vmatpush.bf16.msra.mxu0 0
    %833 = vmatpush.bf16.msra.mxu0 0
    %834 = vmatpush.bf16.msra.mxu0 0
    %835 = vmatpush.bf16.msra.mxu0 0
    %836 = vmatpush.bf16.msra.mxu0 %v821
    %837 = vmatpush.bf16.msra.mxu0 %v820
    %838 = vmatmul.bf16.gmra.mxu0 %v828
    %v839 = vpop.f32.mrf.mxu0
    %v840 = vadd.f32 %v825, %v839
    %v841 = vpop.f32.mrf.mxu0
    %842 = vdwg.mxu0
    %v843 = vxor.u32 %v840, 2147483648
    %v844 = vmul.f32 %v843, 1.442695
    %v845 = vpow.pop %v844
    %v846 = vadd.f32 %v845, 1.0
    %v847 = vrcp.pop %v846
    %v848 = vmul.f32 %v846, %v847
    %v849 = vsub.f32 1.0, %v848
    %v850 = vmul.f32 %v847, %v849
    %v851 = vadd.f32 %v847, %v850
    %vm852 = vweird.f32 %v846
    %vm853 = vweird.f32 %v847
    %vm854 = vmor %vm852, %vm853
    %v855 = vsel %vm854, %v847, %v851
    %v856 = vand.u32 2147483647, %v846
    %vm857 = vcmp.eq.f32.partialorder %v856, 8.507059e+37
    %v858 = vand.u32 %v846, 2147483648
    %v859 = vor.u32 1.1754944e-38, %v858
    %v860 = vsel %vm857, %v859, %v855
    %v861 = vmul.f32 1.0, %v860
    %v862 = vsel %vm207, %v840, -inf
    %863 = vmax.xlane.f32.xlu0 %v862
    %v864 = vpop.xlane.xlu0 %863
    %v865 = vsub.f32 %v840, %v864
    %v866 = vmul.f32 %v865, 1.442695
    %v867 = vpow.pop %v866
    %v868 = vpack.c.bf16 %v867, %v867
    %870 = vrot.lane.b32.xlu0 %v868, 124
    %v871 = vpop.permute.xlu0 %870
    %v873 = vsel %vm105, %v871, 0
    %875 = vmatpush.bf16.msra.mxu0 0
    %876 = vmatpush.bf16.msra.mxu0 0
    %877 = vmatpush.bf16.msra.mxu0 0
    %878 = vmatpush.bf16.msra.mxu0 0
    %879 = vmatpush.bf16.msra.mxu0 0
    %880 = vmatpush.bf16.msra.mxu0 0
    %881 = vmatpush.bf16.msra.mxu0 %v233
    %882 = vmatpush.bf16.msra.mxu0 %v232
    %883 = vmatmul.bf16.gmra.mxu0 %v873
    %v884 = vpop.f32.mrf.mxu0
    %v885 = vadd.f32 0.0, %v884
    %v886 = vpop.f32.mrf.mxu0
    %887 = vdwg.mxu0
    %v888 = vmax.f32 %v885, 1e-30
    %v889 = vrcp.pop %v888
    %v890 = vmul.f32 %v861, %v889
    %v891 = vpack.c.bf16 %v890, %v890
    %v893 = vsel %vm260, %v891, 0
    %895 = vmatpush.bf16.msra.mxu0 0
    %896 = vmatpush.bf16.msra.mxu0 0
    %897 = vmatpush.bf16.msra.mxu0 0
    %898 = vmatpush.bf16.msra.mxu0 0
    %899 = vmatpush.bf16.msra.mxu0 0
    %900 = vmatpush.bf16.msra.mxu0 0
    %901 = vmatpush.bf16.msra.mxu0 0
    %902 = vmatpush.bf16.msra.mxu0 %v266
    %903 = vmatmul.bf16.gmra.mxu0 %v893
    %v904 = vpop.f32.mrf.mxu0
    %v905 = vadd.f32 0.0, %v904
    %v906 = vpop.f32.mrf.mxu0
    %907 = vdwg.mxu0
    %909 = vrot.lane.b32.xlu0 %v905, 4
    %v910 = vpop.permute.xlu0 %909
    %v912 = vmul.f32 %v867, %v910
    %913 = vxpose.xlu0.b32.start [1/16] %v808, 128
    %914 = vxpose.xlu0.b32.cont [2/16] 0.0, 128
    %915 = vxpose.xlu0.b32.cont [3/16] 0.0, 128
    %916 = vxpose.xlu0.b32.cont [4/16] 0.0, 128
    %917 = vxpose.xlu0.b32.cont [5/16] 0.0, 128
    %918 = vxpose.xlu0.b32.cont [6/16] 0.0, 128
    %919 = vxpose.xlu0.b32.cont [7/16] 0.0, 128
    %920 = vxpose.xlu0.b32.cont [8/16] 0.0, 128
    %921 = vxpose.xlu0.b32.cont [9/16] 0.0, 128
    %922 = vxpose.xlu0.b32.cont [10/16] 0.0, 128
    %923 = vxpose.xlu0.b32.cont [11/16] 0.0, 128
    %924 = vxpose.xlu0.b32.cont [12/16] 0.0, 128
    %925 = vxpose.xlu0.b32.cont [13/16] 0.0, 128
    %926 = vxpose.xlu0.b32.cont [14/16] 0.0, 128
    %927 = vxpose.xlu0.b32.cont [15/16] 0.0, 128
    %928 = vxpose.xlu0.b32.end [16/16] 0.0, 128
    %v929 = vpop.trf.xlu0
    %v930 = vpop.trf.xlu0
    %v931 = vpop.trf.xlu0
    %v932 = vpop.trf.xlu0
    %v933 = vpop.trf.xlu0
    %v934 = vpop.trf.xlu0
    %v935 = vpop.trf.xlu0
    %v936 = vpop.trf.xlu0
    %v937 = vpop.trf.xlu0
    %v938 = vpop.trf.xlu0
    %v939 = vpop.trf.xlu0
    %v940 = vpop.trf.xlu0
    %v941 = vpop.trf.xlu0
    %v942 = vpop.trf.xlu0
    %v943 = vpop.trf.xlu0
    %v944 = vpop.trf.xlu0
    %v945 = vpack.c.bf16 %v929, %v929
    %v946 = vpack.c.bf16 %v912, %v912
    %vm947 = vcmask 93216
    %v948 = vsel %vm947, %v912, 0.0
    %v949 = vrot.slane %v948, 4
    %v950 = vadd.f32 %v948, %v949
    %v951 = vrot.slane %v950, 2
    %v952 = vadd.f32 %v950, %v951
    %v953 = vrot.slane %v952, 1
    %v954 = vadd.f32 %v952, %v953
    %v955 = vadd.f32 %v954, 0.0
    %v956 = vpack.c.bf16 %v930, %v930
    %958 = vrot.lane.b32.xlu0 %v946, 116
    %v959 = vpop.permute.xlu0 %958
    %v961 = vsel %vm260, %v956, 0
    %v964 = vsel %vm264, %v959, 0
    %966 = vmatpush.bf16.msra.mxu0 0
    %967 = vmatpush.bf16.msra.mxu0 0
    %968 = vmatpush.bf16.msra.mxu0 0
    %969 = vmatpush.bf16.msra.mxu0 0
    %970 = vmatpush.bf16.msra.mxu0 0
    %971 = vmatpush.bf16.msra.mxu0 0
    %972 = vmatpush.bf16.msra.mxu0 0
    %973 = vmatpush.bf16.msra.mxu0 %v964
    %974 = vmatmul.bf16.gmra.mxu0 %v961
    %v975 = vpop.f32.mrf.mxu0
    %v976 = vadd.f32 0.0, %v975
    %v977 = vpop.f32.mrf.mxu0
    %978 = vdwg.mxu0
    %979 = vrot.lane.b32.xlu0 %v946, 124
    %v980 = vpop.permute.xlu0 %979
    %v982 = vsel %vm260, %v945, 0
    %v985 = vsel %vm264, %v980, 0
    %987 = vmatpush.bf16.msra.mxu0 0
    %988 = vmatpush.bf16.msra.mxu0 0
    %989 = vmatpush.bf16.msra.mxu0 0
    %990 = vmatpush.bf16.msra.mxu0 0
    %991 = vmatpush.bf16.msra.mxu0 0
    %992 = vmatpush.bf16.msra.mxu0 0
    %993 = vmatpush.bf16.msra.mxu0 0
    %994 = vmatpush.bf16.msra.mxu0 %v985
    %995 = vmatmul.bf16.gmra.mxu0 %v982
    %v996 = vpop.f32.mrf.mxu0
    %v997 = vadd.f32 %v976, %v996
    %v998 = vpop.f32.mrf.mxu0
    %999 = vdwg.mxu0
    %vm1000 = vcmask 158816
    %v1001 = vsel %vm1000, %v912, 0.0
    %v1002 = vrot.slane %v1001, 4
    %v1003 = vadd.f32 %v1001, %v1002
    %v1004 = vrot.slane %v1003, 2
    %v1005 = vadd.f32 %v1003, %v1004
    %v1006 = vrot.slane %v1005, 1
    %v1007 = vadd.f32 %v1005, %v1006
    %1009 = vrot.lane.b32.xlu0 %v1007, 120
    %v1010 = vpop.permute.xlu0 %1009
    %v1012 = vadd.f32 %v955, %v1010
    %v1013 = vpack.c.bf16 %v931, %v931
    %1014 = vrot.lane.b32.xlu0 %v946, 108
    %v1015 = vpop.permute.xlu0 %1014
    %v1017 = vsel %vm260, %v1013, 0
    %v1020 = vsel %vm264, %v1015, 0
    %1022 = vmatpush.bf16.msra.mxu0 0
    %1023 = vmatpush.bf16.msra.mxu0 0
    %1024 = vmatpush.bf16.msra.mxu0 0
    %1025 = vmatpush.bf16.msra.mxu0 0
    %1026 = vmatpush.bf16.msra.mxu0 0
    %1027 = vmatpush.bf16.msra.mxu0 0
    %1028 = vmatpush.bf16.msra.mxu0 0
    %1029 = vmatpush.bf16.msra.mxu0 %v1020
    %1030 = vmatmul.bf16.gmra.mxu0 %v1017
    %v1031 = vpop.f32.mrf.mxu0
    %v1032 = vadd.f32 0.0, %v1031
    %v1033 = vpop.f32.mrf.mxu0
    %1034 = vdwg.mxu0
    %v1035 = vadd.f32 %v997, %v1032
    %vm1036 = vcmask 224416
    %v1037 = vsel %vm1036, %v912, 0.0
    %v1038 = vrot.slane %v1037, 4
    %v1039 = vadd.f32 %v1037, %v1038
    %v1040 = vrot.slane %v1039, 2
    %v1041 = vadd.f32 %v1039, %v1040
    %v1042 = vrot.slane %v1041, 1
    %v1043 = vadd.f32 %v1041, %v1042
    %1045 = vrot.lane.b32.xlu0 %v1043, 112
    %v1046 = vpop.permute.xlu0 %1045
    %v1048 = vadd.f32 %v1012, %v1046
    %v1049 = vpack.c.bf16 %v932, %v932
    %1050 = vrot.lane.b32.xlu0 %v946, 100
    %v1051 = vpop.permute.xlu0 %1050
    %v1053 = vsel %vm260, %v1049, 0
    %v1056 = vsel %vm264, %v1051, 0
    %1058 = vmatpush.bf16.msra.mxu0 0
    %1059 = vmatpush.bf16.msra.mxu0 0
    %1060 = vmatpush.bf16.msra.mxu0 0
    %1061 = vmatpush.bf16.msra.mxu0 0
    %1062 = vmatpush.bf16.msra.mxu0 0
    %1063 = vmatpush.bf16.msra.mxu0 0
    %1064 = vmatpush.bf16.msra.mxu0 0
    %1065 = vmatpush.bf16.msra.mxu0 %v1056
    %1066 = vmatmul.bf16.gmra.mxu0 %v1053
    %v1067 = vpop.f32.mrf.mxu0
    %v1068 = vadd.f32 0.0, %v1067
    %v1069 = vpop.f32.mrf.mxu0
    %1070 = vdwg.mxu0
    %v1071 = vadd.f32 %v1035, %v1068
    %vm1072 = vcmask 290016
    %v1073 = vsel %vm1072, %v912, 0.0
    %v1074 = vrot.slane %v1073, 4
    %v1075 = vadd.f32 %v1073, %v1074
    %v1076 = vrot.slane %v1075, 2
    %v1077 = vadd.f32 %v1075, %v1076
    %v1078 = vrot.slane %v1077, 1
    %v1079 = vadd.f32 %v1077, %v1078
    %1081 = vrot.lane.b32.xlu0 %v1079, 104
    %v1082 = vpop.permute.xlu0 %1081
    %v1084 = vadd.f32 %v1048, %v1082
    %v1085 = vperm.slane %v1084, 0
    %1087 = vrot.lane.b32.xlu0 %v774, 4
    %v1088 = vpop.permute.xlu0 %1087
    %v1090 = vmul.f32 %v1085, %v1088
    %1092 = vrot.lane.b32.xlu0 %v1090, 124
    %v1093 = vpop.permute.xlu0 %1092
    %v1095 = vsub.f32 %v1071, %v1093
    %v1096 = vmul.f32 %v1095, %v1095
    %v1097 = vsel %vm339, %v1096, 0.0
    %v1098 = vrot.slane %v1097, 4
    %v1099 = vadd.f32 %v1097, %v1098
    %v1100 = vrot.slane %v1099, 2
    %v1101 = vadd.f32 %v1099, %v1100
    %v1102 = vrot.slane %v1101, 1
    %v1103 = vadd.f32 %v1101, %v1102
    %v1104 = vmax.f32 %v1103, 1e-24
    %v1105 = vrsqrt.pop %v1104
    %v1106 = vmul.f32 %v1105, %v1104
    %v1107 = vmul.f32 %v1106, %v1105
    %v1108 = vmul.f32 0.5, %v1107
    %v1109 = vsub.f32 1.5, %v1108
    %v1110 = vmul.f32 %v1105, %v1109
    %vm1111 = vweird.f32 %v1104
    %vm1112 = vweird.f32 %v1105
    %vm1113 = vmor %vm1111, %vm1112
    %v1114 = vsel %vm1113, %v1105, %v1110
    %v1115 = vmul.f32 %v1095, %v1114
    %v1116 = vpack.c.bf16 %v1115, %v1115
    %v1118 = vsel %vm339, %v1116, 0
    %v1121 = vsel %vm343, %v775, 0
    %1123 = vmatpush.bf16.msra.mxu0 0
    %1124 = vmatpush.bf16.msra.mxu0 0
    %1125 = vmatpush.bf16.msra.mxu0 0
    %1126 = vmatpush.bf16.msra.mxu0 0
    %1127 = vmatpush.bf16.msra.mxu0 0
    %1128 = vmatpush.bf16.msra.mxu0 0
    %1129 = vmatpush.bf16.msra.mxu0 0
    %1130 = vmatpush.bf16.msra.mxu0 %v1121
    %1131 = vmatmul.bf16.gmra.mxu0 %v1118
    %v1132 = vpop.f32.mrf.mxu0
    %v1133 = vadd.f32 0.0, %v1132
    %v1134 = vpop.f32.mrf.mxu0
    %1135 = vdwg.mxu0
    %v1136 = vunpack.c.l.bf16 %v776
    %v1137 = vmul.f32 %v1133, %v1136
    %v1138 = vsel %vm151, %v1137, 0.0
    %v1139 = vrot.slane %v1138, 4
    %v1140 = vadd.f32 %v1138, %v1139
    %v1141 = vrot.slane %v1140, 2
    %v1142 = vadd.f32 %v1140, %v1141
    %v1143 = vrot.slane %v1142, 1
    %v1144 = vadd.f32 %v1142, %v1143
    %v1146 = vrot.slane %v912, 4
    %v1148 = vsel %vm947, %v1146, 0.0
    %v1149 = vrot.slane %v1148, 4
    %v1150 = vadd.f32 %v1148, %v1149
    %v1151 = vrot.slane %v1150, 2
    %v1152 = vadd.f32 %v1150, %v1151
    %v1153 = vrot.slane %v1152, 1
    %v1154 = vadd.f32 %v1152, %v1153
    %v1155 = vadd.f32 %v1154, 0.0
    %1157 = vrot.lane.b32.xlu0 %v956, 124
    %v1158 = vpop.permute.xlu0 %1157
    %v1159 = vrot.slane %v946, 2
    %1160 = vrot.lane.b32.xlu0 %v1159, 116
    %v1161 = vpop.permute.xlu0 %1160
    %v1163 = vsel %vm260, %v1158, 0
    %v1166 = vsel %vm264, %v1161, 0
    %1168 = vmatpush.bf16.msra.mxu0 0
    %1169 = vmatpush.bf16.msra.mxu0 0
    %1170 = vmatpush.bf16.msra.mxu0 0
    %1171 = vmatpush.bf16.msra.mxu0 0
    %1172 = vmatpush.bf16.msra.mxu0 0
    %1173 = vmatpush.bf16.msra.mxu0 0
    %1174 = vmatpush.bf16.msra.mxu0 0
    %1175 = vmatpush.bf16.msra.mxu0 %v1166
    %1176 = vmatmul.bf16.gmra.mxu0 %v1163
    %v1177 = vpop.f32.mrf.mxu0
    %v1178 = vadd.f32 0.0, %v1177
    %v1179 = vpop.f32.mrf.mxu0
    %1180 = vdwg.mxu0
    %1182 = vrot.lane.b32.xlu0 %v945, 124
    %v1183 = vpop.permute.xlu0 %1182
    %1184 = vrot.lane.b32.xlu0 %v1159, 124
    %v1185 = vpop.permute.xlu0 %1184
    %v1187 = vsel %vm260, %v1183, 0
    %v1190 = vsel %vm264, %v1185, 0
    %1192 = vmatpush.bf16.msra.mxu0 0
    %1193 = vmatpush.bf16.msra.mxu0 0
    %1194 = vmatpush.bf16.msra.mxu0 0
    %1195 = vmatpush.bf16.msra.mxu0 0
    %1196 = vmatpush.bf16.msra.mxu0 0
    %1197 = vmatpush.bf16.msra.mxu0 0
    %1198 = vmatpush.bf16.msra.mxu0 0
    %1199 = vmatpush.bf16.msra.mxu0 %v1190
    %1200 = vmatmul.bf16.gmra.mxu0 %v1187
    %v1201 = vpop.f32.mrf.mxu0
    %v1202 = vadd.f32 %v1178, %v1201
    %v1203 = vpop.f32.mrf.mxu0
    %1204 = vdwg.mxu0
    %v1205 = vsel %vm1000, %v1146, 0.0
    %v1206 = vrot.slane %v1205, 4
    %v1207 = vadd.f32 %v1205, %v1206
    %v1208 = vrot.slane %v1207, 2
    %v1209 = vadd.f32 %v1207, %v1208
    %v1210 = vrot.slane %v1209, 1
    %v1211 = vadd.f32 %v1209, %v1210
    %1213 = vrot.lane.b32.xlu0 %v1211, 120
    %v1214 = vpop.permute.xlu0 %1213
    %v1216 = vadd.f32 %v1155, %v1214
    %1218 = vrot.lane.b32.xlu0 %v1013, 124
    %v1219 = vpop.permute.xlu0 %1218
    %1220 = vrot.lane.b32.xlu0 %v1159, 108
    %v1221 = vpop.permute.xlu0 %1220
    %v1223 = vsel %vm260, %v1219, 0
    %v1226 = vsel %vm264, %v1221, 0
    %1228 = vmatpush.bf16.msra.mxu0 0
    %1229 = vmatpush.bf16.msra.mxu0 0
    %1230 = vmatpush.bf16.msra.mxu0 0
    %1231 = vmatpush.bf16.msra.mxu0 0
    %1232 = vmatpush.bf16.msra.mxu0 0
    %1233 = vmatpush.bf16.msra.mxu0 0
    %1234 = vmatpush.bf16.msra.mxu0 0
    %1235 = vmatpush.bf16.msra.mxu0 %v1226
    %1236 = vmatmul.bf16.gmra.mxu0 %v1223
    %v1237 = vpop.f32.mrf.mxu0
    %v1238 = vadd.f32 0.0, %v1237
    %v1239 = vpop.f32.mrf.mxu0
    %1240 = vdwg.mxu0
    %v1241 = vadd.f32 %v1202, %v1238
    %v1242 = vsel %vm1036, %v1146, 0.0
    %v1243 = vrot.slane %v1242, 4
    %v1244 = vadd.f32 %v1242, %v1243
    %v1245 = vrot.slane %v1244, 2
    %v1246 = vadd.f32 %v1244, %v1245
    %v1247 = vrot.slane %v1246, 1
    %v1248 = vadd.f32 %v1246, %v1247
    %1250 = vrot.lane.b32.xlu0 %v1248, 112
    %v1251 = vpop.permute.xlu0 %1250
    %v1253 = vadd.f32 %v1216, %v1251
    %1255 = vrot.lane.b32.xlu0 %v1049, 124
    %v1256 = vpop.permute.xlu0 %1255
    %1257 = vrot.lane.b32.xlu0 %v1159, 100
    %v1258 = vpop.permute.xlu0 %1257
    %v1260 = vsel %vm260, %v1256, 0
    %v1263 = vsel %vm264, %v1258, 0
    %1265 = vmatpush.bf16.msra.mxu0 0
    %1266 = vmatpush.bf16.msra.mxu0 0
    %1267 = vmatpush.bf16.msra.mxu0 0
    %1268 = vmatpush.bf16.msra.mxu0 0
    %1269 = vmatpush.bf16.msra.mxu0 0
    %1270 = vmatpush.bf16.msra.mxu0 0
    %1271 = vmatpush.bf16.msra.mxu0 0
    %1272 = vmatpush.bf16.msra.mxu0 %v1263
    %1273 = vmatmul.bf16.gmra.mxu0 %v1260
    %v1274 = vpop.f32.mrf.mxu0
    %v1275 = vadd.f32 0.0, %v1274
    %v1276 = vpop.f32.mrf.mxu0
    %1277 = vdwg.mxu0
    %v1278 = vadd.f32 %v1241, %v1275
    %v1279 = vsel %vm1072, %v1146, 0.0
    %v1280 = vrot.slane %v1279, 4
    %v1281 = vadd.f32 %v1279, %v1280
    %v1282 = vrot.slane %v1281, 2
    %v1283 = vadd.f32 %v1281, %v1282
    %v1284 = vrot.slane %v1283, 1
    %v1285 = vadd.f32 %v1283, %v1284
    %1287 = vrot.lane.b32.xlu0 %v1285, 104
    %v1288 = vpop.permute.xlu0 %1287
    %v1290 = vadd.f32 %v1253, %v1288
    %v1291 = vperm.slane %v1290, 0
    %v1292 = vmul.f32 %v1291, %v1088
    %1294 = vrot.lane.b32.xlu0 %v1292, 124
    %v1295 = vpop.permute.xlu0 %1294
    %v1297 = vsub.f32 %v1278, %v1295
    %v1298 = vmul.f32 %v1297, %v1297
    %v1299 = vsel %vm339, %v1298, 0.0
    %v1300 = vrot.slane %v1299, 4
    %v1301 = vadd.f32 %v1299, %v1300
    %v1302 = vrot.slane %v1301, 2
    %v1303 = vadd.f32 %v1301, %v1302
    %v1304 = vrot.slane %v1303, 1
    %v1305 = vadd.f32 %v1303, %v1304
    %v1306 = vmax.f32 %v1305, 1e-24
    %v1307 = vrsqrt.pop %v1306
    %v1308 = vmul.f32 %v1307, %v1306
    %v1309 = vmul.f32 %v1308, %v1307
    %v1310 = vmul.f32 0.5, %v1309
    %v1311 = vsub.f32 1.5, %v1310
    %v1312 = vmul.f32 %v1307, %v1311
    %vm1313 = vweird.f32 %v1306
    %vm1314 = vweird.f32 %v1307
    %vm1315 = vmor %vm1313, %vm1314
    %v1316 = vsel %vm1315, %v1307, %v1312
    %v1317 = vmul.f32 %v1297, %v1316
    %v1318 = vpack.c.bf16 %v1317, %v1317
    %v1320 = vsel %vm339, %v1318, 0
    %1322 = vmatpush.bf16.msra.mxu0 0
    %1323 = vmatpush.bf16.msra.mxu0 0
    %1324 = vmatpush.bf16.msra.mxu0 0
    %1325 = vmatpush.bf16.msra.mxu0 0
    %1326 = vmatpush.bf16.msra.mxu0 0
    %1327 = vmatpush.bf16.msra.mxu0 0
    %1328 = vmatpush.bf16.msra.mxu0 0
    %1329 = vmatpush.bf16.msra.mxu0 %v1121
    %1330 = vmatmul.bf16.gmra.mxu0 %v1320
    %v1331 = vpop.f32.mrf.mxu0
    %v1332 = vadd.f32 0.0, %v1331
    %v1333 = vpop.f32.mrf.mxu0
    %1334 = vdwg.mxu0
    %v1335 = vmul.f32 %v1332, %v1136
    %v1336 = vsel %vm151, %v1335, 0.0
    %v1337 = vrot.slane %v1336, 4
    %v1338 = vadd.f32 %v1336, %v1337
    %v1339 = vrot.slane %v1338, 2
    %v1340 = vadd.f32 %v1338, %v1339
    %v1341 = vrot.slane %v1340, 1
    %v1342 = vadd.f32 %v1340, %v1341
    %v1343 = vsel %vm763, %v1144, %v1342
    %v1344 = vld [vmem:[%s17] sm:$0x3]
    %v1345 = vpack.c.bf16 %v764, %v764
    %v1346 = vpack.c.bf16 %v1343, %v1343
    %v1347 = vld [vmem:[%s13] sm:$0xf]
    %v1348 = vld [vmem:[%s13 + $0x4] sm:$0xf]
    %v1349 = vld [vmem:[%s13 + $0x8] sm:$0xf]
    %v1350 = vld [vmem:[%s13 + $0xc] sm:$0xf]
    %v1351 = vld [vmem:[%s13 + $0x10] sm:$0xf]
    %v1352 = vld [vmem:[%s13 + $0x14] sm:$0xf]
    %v1353 = vld [vmem:[%s13 + $0x18] sm:$0xf]
    %v1354 = vld [vmem:[%s13 + $0x1c] sm:$0xf]
    %v1355 = vld [vmem:[%s13 + $0x20] sm:$0xf]
    %v1356 = vld [vmem:[%s13 + $0x24] sm:$0xf]
    %v1357 = vld [vmem:[%s13 + $0x28] sm:$0xf]
    %v1358 = vld [vmem:[%s13 + $0x2c] sm:$0xf]
    %v1359 = vld [vmem:[%s13 + $0x30] sm:$0xf]
    %v1360 = vld [vmem:[%s13 + $0x34] sm:$0xf]
    %v1361 = vld [vmem:[%s13 + $0x38] sm:$0xf]
    %v1362 = vld [vmem:[%s13 + $0x3c] sm:$0xf]
    %v1363 = vld [vmem:[%s13 + $0x40] sm:$0xf]
    %v1364 = vld [vmem:[%s13 + $0x44] sm:$0xf]
    %v1365 = vld [vmem:[%s13 + $0x48] sm:$0xf]
    %v1366 = vld [vmem:[%s13 + $0x4c] sm:$0xf]
    %v1367 = vld [vmem:[%s13 + $0x50] sm:$0xf]
    %v1368 = vld [vmem:[%s13 + $0x54] sm:$0xf]
    %v1369 = vld [vmem:[%s13 + $0x58] sm:$0xf]
    %v1370 = vld [vmem:[%s13 + $0x5c] sm:$0xf]
    %v1372 = vperm.slane %v1344, 0
    %v1398 = vunpack.c.l.b16 %v1347
    %v1399 = vunpack.c.l.b16 %v1348
    %v1400 = vunpack.c.l.b16 %v1349
    %v1401 = vunpack.c.l.b16 %v1350
    %v1402 = vunpack.c.l.b16 %v1351
    %v1403 = vunpack.c.l.b16 %v1352
    %v1404 = vunpack.c.l.b16 %v1353
    %v1405 = vunpack.c.l.b16 %v1354
    %v1406 = vunpack.c.l.b16 %v1355
    %v1407 = vunpack.c.l.b16 %v1356
    %v1408 = vunpack.c.l.b16 %v1357
    %v1409 = vunpack.c.l.b16 %v1358
    %v1410 = vunpack.c.l.b16 %v1359
    %v1411 = vunpack.c.l.b16 %v1360
    %v1412 = vunpack.c.l.b16 %v1361
    %v1413 = vunpack.c.l.b16 %v1362
    %v1414 = vunpack.c.l.b16 %v1363
    %v1415 = vunpack.c.l.b16 %v1364
    %v1416 = vunpack.c.l.b16 %v1365
    %v1417 = vunpack.c.l.b16 %v1366
    %v1418 = vunpack.c.l.b16 %v1367
    %v1419 = vunpack.c.l.b16 %v1368
    %v1420 = vunpack.c.l.b16 %v1369
    %v1421 = vunpack.c.l.b16 %v1370
    %v1422 = vpack.c.b16 %v1399, %v1398
    %v1423 = vpack.c.b16 %v1401, %v1400
    %v1424 = vpack.c.b16 %v1403, %v1402
    %v1425 = vpack.c.b16 %v1405, %v1404
    %v1426 = vpack.c.b16 %v1407, %v1406
    %v1427 = vpack.c.b16 %v1409, %v1408
    %v1428 = vpack.c.b16 %v1411, %v1410
    %v1429 = vpack.c.b16 %v1413, %v1412
    %v1430 = vpack.c.b16 %v1415, %v1414
    %v1431 = vpack.c.b16 %v1417, %v1416
    %v1432 = vpack.c.b16 %v1419, %v1418
    %v1433 = vpack.c.b16 %v1421, %v1420
    %v1447 = vsel %vm151, %v1346, 0
    %1449 = vmatpush.bf16.msra.mxu0 %v1429
    %1450 = vmatpush.bf16.msra.mxu0 %v1428
    %1451 = vmatpush.bf16.msra.mxu0 %v1427
    %1452 = vmatpush.bf16.msra.mxu0 %v1426
    %1453 = vmatpush.bf16.msra.mxu0 %v1425
    %1454 = vmatpush.bf16.msra.mxu0 %v1424
    %1455 = vmatpush.bf16.msra.mxu0 %v1423
    %1456 = vmatpush.bf16.msra.mxu0 %v1422
    %1457 = vmatmul.bf16.gmra.mxu0 %v1345
    %v1458 = vpop.f32.mrf.mxu0
    %v1459 = vadd.f32 %v1372, %v1458
    %v1460 = vpop.f32.mrf.mxu0
    %1461 = vdwg.mxu0
    %1462 = vmatpush.bf16.msra.mxu0 0
    %1463 = vmatpush.bf16.msra.mxu0 0
    %1464 = vmatpush.bf16.msra.mxu0 0
    %1465 = vmatpush.bf16.msra.mxu0 0
    %1466 = vmatpush.bf16.msra.mxu0 %v1433
    %1467 = vmatpush.bf16.msra.mxu0 %v1432
    %1468 = vmatpush.bf16.msra.mxu0 %v1431
    %1469 = vmatpush.bf16.msra.mxu0 %v1430
    %1470 = vmatmul.bf16.gmra.mxu0 %v1447
    %v1471 = vpop.f32.mrf.mxu0
    %v1472 = vadd.f32 %v1459, %v1471
    %v1473 = vpop.f32.mrf.mxu0
    %1474 = vdwg.mxu0
    %v1475 = vpack.c.bf16 %v1472, %v1472
    %v1476 = vld [vmem:[%s14] sm:$0xf]
    %v1477 = vld [vmem:[%s14 + $0x4] sm:$0xf]
    %v1478 = vld [vmem:[%s14 + $0x8] sm:$0xf]
    %v1479 = vld [vmem:[%s14 + $0xc] sm:$0xf]
    %v1480 = vld [vmem:[%s14 + $0x10] sm:$0xf]
    %v1481 = vld [vmem:[%s14 + $0x14] sm:$0xf]
    %v1482 = vld [vmem:[%s14 + $0x18] sm:$0xf]
    %v1483 = vld [vmem:[%s14 + $0x1c] sm:$0xf]
    %v1492 = vunpack.c.l.b16 %v1476
    %v1493 = vunpack.c.l.b16 %v1477
    %v1494 = vunpack.c.l.b16 %v1478
    %v1495 = vunpack.c.l.b16 %v1479
    %v1496 = vunpack.c.l.b16 %v1480
    %v1497 = vunpack.c.l.b16 %v1481
    %v1498 = vunpack.c.l.b16 %v1482
    %v1499 = vunpack.c.l.b16 %v1483
    %v1500 = vpack.c.b16 %v1493, %v1492
    %v1501 = vpack.c.b16 %v1495, %v1494
    %v1502 = vpack.c.b16 %v1497, %v1496
    %v1503 = vpack.c.b16 %v1499, %v1498
    %v1509 = vsel %vm151, %v1475, 0
    %1511 = vmatpush.bf16.msra.mxu0 0
    %1512 = vmatpush.bf16.msra.mxu0 0
    %1513 = vmatpush.bf16.msra.mxu0 0
    %1514 = vmatpush.bf16.msra.mxu0 0
    %1515 = vmatpush.bf16.msra.mxu0 %v1503
    %1516 = vmatpush.bf16.msra.mxu0 %v1502
    %1517 = vmatpush.bf16.msra.mxu0 %v1501
    %1518 = vmatpush.bf16.msra.mxu0 %v1500
    %1519 = vmatmul.bf16.gmra.mxu0 %v1509
    %v1520 = vpop.f32.mrf.mxu0
    %v1521 = vadd.f32 0.0, %v1520
    %v1522 = vpop.f32.mrf.mxu0
    %1523 = vdwg.mxu0
    %v1524 = vmax.f32 %v1521, 0.0
    %v1525 = vpack.c.bf16 %v1524, %v1524
    %v1526 = vld [vmem:[%s15] sm:$0xf]
    %v1527 = vld [vmem:[%s15 + $0x4] sm:$0xf]
    %v1530 = vunpack.c.l.b16 %v1526
    %v1531 = vunpack.c.l.b16 %v1527
    %v1532 = vpack.c.b16 %v1531, %v1530
    %v1535 = vsel %vm794, %v1525, 0
    %1537 = vmatpush.bf16.msra.mxu0 0
    %1538 = vmatpush.bf16.msra.mxu0 0
    %1539 = vmatpush.bf16.msra.mxu0 0
    %1540 = vmatpush.bf16.msra.mxu0 0
    %1541 = vmatpush.bf16.msra.mxu0 0
    %1542 = vmatpush.bf16.msra.mxu0 0
    %1543 = vmatpush.bf16.msra.mxu0 0
    %1544 = vmatpush.bf16.msra.mxu0 %v1532
    %1545 = vmatmul.bf16.gmra.mxu0 %v1535
    %v1546 = vpop.f32.mrf.mxu0
    %v1547 = vadd.f32 0.0, %v1546
    %v1548 = vpop.f32.mrf.mxu0
    %1549 = vdwg.mxu0
    %v1550 = vxor.u32 %v1547, 2147483648
    %v1551 = vmul.f32 %v1550, 1.442695
    %v1552 = vpow.pop %v1551
    %v1553 = vadd.f32 %v1552, 1.0
    %v1554 = vrcp.pop %v1553
    %v1555 = vmul.f32 %v1553, %v1554
    %v1556 = vsub.f32 1.0, %v1555
    %v1557 = vmul.f32 %v1554, %v1556
    %v1558 = vadd.f32 %v1554, %v1557
    %vm1559 = vweird.f32 %v1553
    %vm1560 = vweird.f32 %v1554
    %vm1561 = vmor %vm1559, %vm1560
    %v1562 = vsel %vm1561, %v1554, %v1558
    %v1563 = vand.u32 2147483647, %v1553
    %vm1564 = vcmp.eq.f32.partialorder %v1563, 8.507059e+37
    %v1565 = vand.u32 %v1553, 2147483648
    %v1566 = vor.u32 1.1754944e-38, %v1565
    %v1567 = vsel %vm1564, %v1566, %v1562
    %v1568 = vmul.f32 1.0, %v1567
    %v1569 = vmul.f32 %v1472, %v1568
    %v1570 = vpack.c.bf16 %v1569, %v1569
    %v1571 = vld [vmem:[%s16] sm:$0xf]
    %v1572 = vld [vmem:[%s16 + $0x4] sm:$0xf]
    %v1573 = vld [vmem:[%s16 + $0x8] sm:$0xf]
    %v1574 = vld [vmem:[%s16 + $0xc] sm:$0xf]
    %v1575 = vld [vmem:[%s16 + $0x10] sm:$0xf]
    %v1576 = vld [vmem:[%s16 + $0x14] sm:$0xf]
    %v1577 = vld [vmem:[%s16 + $0x18] sm:$0xf]
    %v1578 = vld [vmem:[%s16 + $0x1c] sm:$0xf]
    %v1579 = vperm.slane %v1344, 1
    %v1588 = vunpack.c.l.b16 %v1571
    %v1589 = vunpack.c.l.b16 %v1572
    %v1590 = vunpack.c.l.b16 %v1573
    %v1591 = vunpack.c.l.b16 %v1574
    %v1592 = vunpack.c.l.b16 %v1575
    %v1593 = vunpack.c.l.b16 %v1576
    %v1594 = vunpack.c.l.b16 %v1577
    %v1595 = vunpack.c.l.b16 %v1578
    %v1596 = vpack.c.b16 %v1589, %v1588
    %v1597 = vpack.c.b16 %v1591, %v1590
    %v1598 = vpack.c.b16 %v1593, %v1592
    %v1599 = vpack.c.b16 %v1595, %v1594
    %1604 = vrot.lane.b32.xlu0 %v1372, 64
    %v1605 = vpop.permute.xlu0 %1604
    %1606 = vrot.lane.b32.xlu0 %v1579, 64
    %v1607 = vpop.permute.xlu0 %1606
    %v1608 = vsel %vm151, %v1605, %v1607
    %v1611 = vsel %vm151, %v1570, 0
    %1613 = vmatpush.bf16.msra.mxu0 0
    %1614 = vmatpush.bf16.msra.mxu0 0
    %1615 = vmatpush.bf16.msra.mxu0 0
    %1616 = vmatpush.bf16.msra.mxu0 0
    %1617 = vmatpush.bf16.msra.mxu0 %v1599
    %1618 = vmatpush.bf16.msra.mxu0 %v1598
    %1619 = vmatpush.bf16.msra.mxu0 %v1597
    %1620 = vmatpush.bf16.msra.mxu0 %v1596
    %1621 = vmatmul.bf16.gmra.mxu0 %v1611
    %v1622 = vpop.f32.mrf.mxu0
    %v1623 = vadd.f32 %v1608, %v1622
    %v1624 = vpop.f32.mrf.mxu0
    %1625 = vdwg.mxu0
    %v1626 = vxor.u32 %v1623, 2147483648
    %v1627 = vmul.f32 %v1626, 1.442695
    %v1628 = vpow.pop %v1627
    %v1629 = vadd.f32 %v1628, 1.0
    %v1630 = vrcp.pop %v1629
    %v1631 = vmul.f32 %v1629, %v1630
    %v1632 = vsub.f32 1.0, %v1631
    %v1633 = vmul.f32 %v1630, %v1632
    %v1634 = vadd.f32 %v1630, %v1633
    %vm1635 = vweird.f32 %v1629
    %vm1636 = vweird.f32 %v1630
    %vm1637 = vmor %vm1635, %vm1636
    %v1638 = vsel %vm1637, %v1630, %v1634
    %v1639 = vand.u32 2147483647, %v1629
    %vm1640 = vcmp.eq.f32.partialorder %v1639, 8.507059e+37
    %v1641 = vand.u32 %v1629, 2147483648
    %v1642 = vor.u32 1.1754944e-38, %v1641
    %v1643 = vsel %vm1640, %v1642, %v1638
    %v1644 = vmul.f32 1.0, %v1643
    %1645 = vst [vmem:[#allocation2] sm:$0x3] %v1623
    %1646 = vst [vmem:[#allocation4] sm:$0x3] %v1644
    // Predicated region
    $region74: #{tpu_custom_call.1} parent=1 // pred_check
      _
    $region75: #{tpu_custom_call.1} parent=1 // pred_check_branch
      %1648 = sbr.rel (0) target = $region77
    $region76: #{tpu_custom_call.1} parent=1 // pred_region
      %1650 = vsyncadd [#allocation3], 0
      %s1652 = sshll.u32 [#allocation2], 4
      %s1653 = int_to_ptr.vmem [resolvable:$true] %s1652
      %s1654 = sshll.u32 %s18, 4
      %s1655 = int_to_ptr.hbm [resolvable:$true] %s1654
      %1657 = dma.vmem_to_hbm [thread:$0]  %s1653, 32, %s1655, [#allocation3]
    $region77: #{tpu_custom_call.1} parent=1 // pred_fallthru
      _
    // Predicated region
    $region78: #{tpu_custom_call.1} parent=1 // pred_check
      _
    $region79: #{tpu_custom_call.1} parent=1 // pred_check_branch
      %1659 = sbr.rel (0) target = $region81
    $region80: #{tpu_custom_call.1} parent=1 // pred_region
      %1661 = vsyncadd [#allocation5], 0
      %s1663 = sshll.u32 [#allocation4], 4
      %s1664 = int_to_ptr.vmem [resolvable:$true] %s1663
      %s1665 = sshll.u32 %s19, 4
      %s1666 = int_to_ptr.hbm [resolvable:$true] %s1665
      %1668 = dma.vmem_to_hbm [thread:$0]  %s1664, 32, %s1666, [#allocation5]
    $region81: #{tpu_custom_call.1} parent=1 // pred_fallthru
      _
    // Predicated region
    $region82: #{tpu_custom_call.1} parent=1 // pred_check
      _
    $region83: #{tpu_custom_call.1} parent=1 // pred_check_branch
      %1670 = sbr.rel (0) target = $region85
    $region84: #{tpu_custom_call.1} parent=1 // pred_region
      %1672 = dma.done [#allocation3], 32
    $region85: #{tpu_custom_call.1} parent=1 // pred_fallthru
      _
    // Predicated region
    $region86: #{tpu_custom_call.1} parent=1 // pred_check
      _
    $region87: #{tpu_custom_call.1} parent=1 // pred_check_branch
      %1674 = sbr.rel (0) target = $region89
    $region88: #{tpu_custom_call.1} parent=1 // pred_region
      %1676 = dma.done [#allocation5], 32
    $region89: #{tpu_custom_call.1} parent=1 // pred_fallthru
      _
    %1677 = vsyncpa [#allocation3], 1
    %1678 = vsyncpa [#allocation5], 1

</llo_original>
